<compile_context>
chip_gen: v6e
topology: v6e:2x2x1
jax: 0.10.0
libtpu: 0.0.40
codegen_flags: <defaults>
</compile_context>

<pallas_src>
import functools

import jax
import jax.numpy as jnp
from jax import lax
from jax.experimental import pallas as pl
from jax.experimental.pallas import tpu as pltpu

VOCAB = 10
EMBED_DIM = 32
INPUT_DIM = 2 * EMBED_DIM   # 64 (concat of two embeddings)
HIDDEN = 64
NUM_CLASSES = 10
OUT_PAD = 128               # lane-dense padded logits width (>= NUM_CLASSES)


def _round_up(n, m):
    return (n + m - 1) // m * m


def rnn_dense_kernel(seq, bb,
                     x_ref, wih0_ref, whh0_ref, b0_ref,
                     wih1_ref, whh1_ref, b1_ref,
                     wd_ref, bd_ref,
                     out_ref,
                     xp_ref, hall_ref, h_ref):
    """One batch block.

    x_ref:   (seq*bb, 64)  time-major within the block (row = t*bb + local_batch)
    out_ref: (seq*bb, 128) lane-dense padded logits
    xp_ref:  (seq*bb, 64)  scratch, hoisted input projections
    hall_ref:(seq*bb, 64)  scratch, per-layer hidden states for all timesteps
    h_ref:   (bb, 64)      scratch, running hidden state
    """
    # ---- Phase 1: hoisted layer-0 input projection (one batched GEMM). ----
    b0 = b0_ref[...]                                             # read bias once
    xp_ref[...] = (jnp.dot(x_ref[...], wih0_ref[...],
                           preferred_element_type=jnp.float32) + b0)

    # ---- Phase 2: layer-0 recurrence: only h @ Whh0 + tanh on the serial path. ----
    whh0 = whh0_ref[...]                                         # hoisted weight read
    h_ref[...] = jnp.zeros_like(h_ref)

    def step0(t, carry):
        r = pl.multiple_of(t * bb, bb)
        h_new = jnp.tanh(xp_ref[pl.ds(r, bb), :]
                         + jnp.dot(h_ref[...], whh0,
                                   preferred_element_type=jnp.float32))
        hall_ref[pl.ds(r, bb), :] = h_new
        h_ref[...] = h_new
        return carry

    lax.fori_loop(0, seq, step0, 0, unroll=True)

    # ---- Phase 3: hoisted layer-1 input projection (one batched GEMM). ----
    b1 = b1_ref[...]
    xp_ref[...] = (jnp.dot(hall_ref[...], wih1_ref[...],
                           preferred_element_type=jnp.float32) + b1)

    # ---- Phase 4: layer-1 recurrence. ----
    whh1 = whh1_ref[...]
    h_ref[...] = jnp.zeros_like(h_ref)

    def step1(t, carry):
        r = pl.multiple_of(t * bb, bb)
        h_new = jnp.tanh(xp_ref[pl.ds(r, bb), :]
                         + jnp.dot(h_ref[...], whh1,
                                   preferred_element_type=jnp.float32))
        hall_ref[pl.ds(r, bb), :] = h_new
        h_ref[...] = h_new
        return carry

    lax.fori_loop(0, seq, step1, 0, unroll=True)

    # ---- Phase 5: dense head as one lane-dense batched GEMM + full-width store. ----
    out_ref[...] = (jnp.dot(hall_ref[...], wd_ref[...],
                            preferred_element_type=jnp.float32) + bd_ref[...])


def init_params(key):
    """Deterministic parameter init matching the PyTorch module's shapes."""
    ks = jax.random.split(key, 12)
    s = 1.0 / jnp.sqrt(HIDDEN)
    u = lambda k, shape: jax.random.uniform(k, shape, jnp.float32, -s, s)
    return {
        "embed": jax.random.normal(ks[0], (VOCAB, EMBED_DIM), jnp.float32),
        # RNN layer 0 (stored transposed to (in, out) so the kernel computes x @ W)
        "wih0": u(ks[1], (INPUT_DIM, HIDDEN)),
        "whh0": u(ks[2], (HIDDEN, HIDDEN)),
        "b0":   u(ks[3], (1, HIDDEN)) + u(ks[4], (1, HIDDEN)),    # b_ih0 + b_hh0
        # RNN layer 1 (independent keys for b_ih1 and b_hh1 — fixes prior key reuse)
        "wih1": u(ks[5], (HIDDEN, HIDDEN)),
        "whh1": u(ks[6], (HIDDEN, HIDDEN)),
        "b1":   u(ks[7], (1, HIDDEN)) + u(ks[8], (1, HIDDEN)),    # b_ih1 + b_hh1
        # Dense (64 -> 10), transposed to (in, out)
        "wd":   u(ks[9], (HIDDEN, NUM_CLASSES)),
        "bd":   u(ks[10], (1, NUM_CLASSES)),
    }


def my_pt_rnn_model_forward(params, num1, num2):
    """num1, num2: int32 (batch, seq) digits in [0, 10). Returns (batch, seq, 10) logits."""
    emb = params["embed"]
    x1 = jnp.take(emb, num1, axis=0)                              # (B, S, 32)
    x2 = jnp.take(emb, num2, axis=0)                              # (B, S, 32)
    x = jnp.concatenate([x1, x2], axis=2).astype(jnp.float32)     # (B, S, 64)
    B, S, _ = x.shape

    # Pad batch to a sublane-friendly multiple of 8 and choose a batch block size.
    if B <= 128:
        bb = _round_up(B, 8)
        bp = bb
    else:
        bb = 128
        bp = _round_up(B, bb)
    nb = bp // bb

    x_pad = jnp.zeros((bp, S, INPUT_DIM), jnp.float32).at[:B].set(x)
    # (nb, S*bb, 64): rows inside a block are time-major (row = t*bb + local_batch).
    xk = (x_pad.reshape(nb, bb, S, INPUT_DIM)
               .transpose(0, 2, 1, 3)
               .reshape(nb, S * bb, INPUT_DIM))

    # Lane-dense dense-head weights: pad output columns 10 -> OUT_PAD with zeros.
    wd_pad = jnp.zeros((HIDDEN, OUT_PAD), jnp.float32).at[:, :NUM_CLASSES].set(params["wd"])
    bd_pad = jnp.zeros((1, OUT_PAD), jnp.float32).at[:, :NUM_CLASSES].set(params["bd"])

    def full_spec(shape):
        zeros = (0,) * len(shape)
        return pl.BlockSpec(shape, lambda b: zeros)

    out = pl.pallas_call(
        functools.partial(rnn_dense_kernel, S, bb),
        out_shape=jax.ShapeDtypeStruct((nb, S * bb, OUT_PAD), jnp.float32),
        grid_spec=pltpu.PrefetchScalarGridSpec(
            num_scalar_prefetch=0,
            grid=(nb,),
            in_specs=[
                pl.BlockSpec((None, S * bb, INPUT_DIM), lambda b: (b, 0, 0)),  # x block
                full_spec((INPUT_DIM, HIDDEN)),   # wih0
                full_spec((HIDDEN, HIDDEN)),      # whh0
                full_spec((1, HIDDEN)),           # b0
                full_spec((HIDDEN, HIDDEN)),      # wih1
                full_spec((HIDDEN, HIDDEN)),      # whh1
                full_spec((1, HIDDEN)),           # b1
                full_spec((HIDDEN, OUT_PAD)),     # wd (lane-padded)
                full_spec((1, OUT_PAD)),          # bd (lane-padded)
            ],
            out_specs=pl.BlockSpec((None, S * bb, OUT_PAD), lambda b: (b, 0, 0)),
            scratch_shapes=[
                pltpu.VMEM((S * bb, HIDDEN), jnp.float32),   # xp: hoisted input projections
                pltpu.VMEM((S * bb, HIDDEN), jnp.float32),   # hall: hidden states, all t
                pltpu.VMEM((bb, HIDDEN), jnp.float32),       # h: running hidden state
            ],
        ),
        compiler_params=pltpu.CompilerParams(
            dimension_semantics=("parallel",)),
    )(xk, params["wih0"], params["whh0"], params["b0"],
      params["wih1"], params["whh1"], params["b1"],
      wd_pad, bd_pad)

    # (nb, S*bb, OUT_PAD) -> (B, S, NUM_CLASSES)
    out = (out.reshape(nb, S, bb, OUT_PAD)
              .transpose(0, 2, 1, 3)
              .reshape(bp, S, OUT_PAD))
    return out[:B, :, :NUM_CLASSES]


def reference_forward(params, num1, num2):
    """Pure-JAX reference mirroring torch semantics, for correctness check."""
    emb = params["embed"]
    x = jnp.concatenate([emb[num1], emb[num2]], axis=2)           # (B, S, 64)
    x = jnp.transpose(x, (1, 0, 2))                               # (S, B, 64)
    seq, batch, _ = x.shape
    h0 = jnp.zeros((batch, HIDDEN), jnp.float32)
    h1 = jnp.zeros((batch, HIDDEN), jnp.float32)
    outs = []
    for t in range(seq):
        h0 = jnp.tanh(x[t] @ params["wih0"] + h0 @ params["whh0"] + params["b0"])
        h1 = jnp.tanh(h0 @ params["wih1"] + h1 @ params["whh1"] + params["b1"])
        outs.append(h1 @ params["wd"] + params["bd"])
    out = jnp.stack(outs, axis=0)                                 # (S, B, 10)
    return jnp.transpose(out, (1, 0, 2))                          # (B, S, 10)


if __name__ == "__main__":
    key = jax.random.PRNGKey(0)
    k_params, k1, k2 = jax.random.split(key, 3)

    params = init_params(k_params)

    batch, seq = 2, 8
    num1 = jax.random.randint(k1, (batch, seq), 0, VOCAB, dtype=jnp.int32)
    num2 = jax.random.randint(k2, (batch, seq), 0, VOCAB, dtype=jnp.int32)

    logits = my_pt_rnn_model_forward(params, num1, num2)
    logits = jax.block_until_ready(logits)

    ref = reference_forward(params, num1, num2)
    assert logits.shape == (batch, seq, NUM_CLASSES)
    assert jnp.allclose(logits, ref, atol=1e-4, rtol=1e-4), \
        float(jnp.max(jnp.abs(logits - ref)))

    print("KERNEL_OK")
</pallas_src>

<mosaic_0001>
module attributes {stable_mosaic.version = 11 : i64} {
  func.func @rnn_dense_kernel(%arg0: i32, %arg1: memref<1x64x64xf32, #tpu.memory_space<vmem>>, %arg2: memref<64x64xf32, #tpu.memory_space<vmem>>, %arg3: memref<64x64xf32, #tpu.memory_space<vmem>>, %arg4: memref<1x64xf32, #tpu.memory_space<vmem>>, %arg5: memref<64x64xf32, #tpu.memory_space<vmem>>, %arg6: memref<64x64xf32, #tpu.memory_space<vmem>>, %arg7: memref<1x64xf32, #tpu.memory_space<vmem>>, %arg8: memref<64x128xf32, #tpu.memory_space<vmem>>, %arg9: memref<1x128xf32, #tpu.memory_space<vmem>>, %arg10: memref<1x64x128xf32, #tpu.memory_space<vmem>>, %arg11: memref<64x64xf32, #tpu.memory_space<vmem>>, %arg12: memref<64x64xf32, #tpu.memory_space<vmem>>, %arg13: memref<8x64xf32, #tpu.memory_space<vmem>>) attributes {dimension_semantics = [#tpu.dimension_semantics<parallel>], iteration_bounds = array<i64: 1>, scalar_prefetch = 0 : i64, scratch_operands = 3 : i64, tpu.core_type = #tpu.core_type<tc>, window_params = [{transform_indices = @transform_0, window_bounds = array<i64: 1, 64, 64>}, {pipeline_mode = #tpu.pipeline_mode<synchronous>, transform_indices = @transform_1, window_bounds = array<i64: 64, 64>}, {pipeline_mode = #tpu.pipeline_mode<synchronous>, transform_indices = @transform_2, window_bounds = array<i64: 64, 64>}, {pipeline_mode = #tpu.pipeline_mode<synchronous>, transform_indices = @transform_3, window_bounds = array<i64: 1, 64>}, {pipeline_mode = #tpu.pipeline_mode<synchronous>, transform_indices = @transform_4, window_bounds = array<i64: 64, 64>}, {pipeline_mode = #tpu.pipeline_mode<synchronous>, transform_indices = @transform_5, window_bounds = array<i64: 64, 64>}, {pipeline_mode = #tpu.pipeline_mode<synchronous>, transform_indices = @transform_6, window_bounds = array<i64: 1, 64>}, {pipeline_mode = #tpu.pipeline_mode<synchronous>, transform_indices = @transform_7, window_bounds = array<i64: 64, 128>}, {pipeline_mode = #tpu.pipeline_mode<synchronous>, transform_indices = @transform_8, window_bounds = array<i64: 1, 128>}, {transform_indices = @transform_9, window_bounds = array<i64: 1, 64, 128>}]} {
    %c0 = arith.constant 0 : index
    %c0_0 = arith.constant 0 : index
    %0 = vector.load %arg4[%c0, %c0_0] : memref<1x64xf32, #tpu.memory_space<vmem>>, vector<1x64xf32>
    %c0_1 = arith.constant 0 : index
    %c0_2 = arith.constant 0 : index
    %c0_3 = arith.constant 0 : index
    %1 = vector.load %arg1[%c0_1, %c0_2, %c0_3] : memref<1x64x64xf32, #tpu.memory_space<vmem>>, vector<1x64x64xf32>
    %2 = vector.shape_cast %1 : vector<1x64x64xf32> to vector<64x64xf32>
    %c0_4 = arith.constant 0 : index
    %c0_5 = arith.constant 0 : index
    %3 = vector.load %arg2[%c0_4, %c0_5] : memref<64x64xf32, #tpu.memory_space<vmem>>, vector<64x64xf32>
    %cst = arith.constant dense<0.000000e+00> : vector<64x64xf32>
    %4 = tpu.matmul %2, %3, %cst {dimension_numbers = #tpu.dot_dimension_numbers<[1], [0], [0], [1], [0, 0, 1, 1], [], []>} : vector<64x64xf32>, vector<64x64xf32>, vector<64x64xf32> -> vector<64x64xf32>
    %5 = vector.broadcast %0 : vector<1x64xf32> to vector<64x64xf32>
    %6 = arith.addf %4, %5 : vector<64x64xf32>
    %c0_6 = arith.constant 0 : index
    %c0_7 = arith.constant 0 : index
    %7 = vector.load %arg11[%c0_6, %c0_7] : memref<64x64xf32, #tpu.memory_space<vmem>>, vector<64x64xf32>
    tpu.vector_store %arg11[%c0_6, %c0_7], %6 {strides = array<i32>} : memref<64x64xf32, #tpu.memory_space<vmem>>, vector<64x64xf32>,
    %c0_8 = arith.constant 0 : index
    %c0_9 = arith.constant 0 : index
    %8 = vector.load %arg3[%c0_8, %c0_9] : memref<64x64xf32, #tpu.memory_space<vmem>>, vector<64x64xf32>
    %cst_10 = arith.constant 0.000000e+00 : f32
    %9 = vector.broadcast %cst_10 : f32 to vector<8x64xf32>
    %c0_11 = arith.constant 0 : index
    %c0_12 = arith.constant 0 : index
    %10 = vector.load %arg13[%c0_11, %c0_12] : memref<8x64xf32, #tpu.memory_space<vmem>>, vector<8x64xf32>
    tpu.vector_store %arg13[%c0_11, %c0_12], %9 {strides = array<i32>} : memref<8x64xf32, #tpu.memory_space<vmem>>, vector<8x64xf32>,
    %c0_i32 = arith.constant 0 : i32
    %c8_i32 = arith.constant 8 : i32
    %11 = arith.muli %c0_i32, %c8_i32 : i32
    %12 = tpu.assume_multiple %11, 8 : i32
    %13 = arith.index_cast %12 : i32 to index
    %c0_13 = arith.constant 0 : index
    %14 = vector.load %arg11[%13, %c0_13] : memref<64x64xf32, #tpu.memory_space<vmem>>, vector<8x64xf32>
    %c0_14 = arith.constant 0 : index
    %c0_15 = arith.constant 0 : index
    %15 = vector.load %arg13[%c0_14, %c0_15] : memref<8x64xf32, #tpu.memory_space<vmem>>, vector<8x64xf32>
    %cst_16 = arith.constant dense<0.000000e+00> : vector<8x64xf32>
    %16 = tpu.matmul %15, %8, %cst_16 {dimension_numbers = #tpu.dot_dimension_numbers<[1], [0], [0], [1], [0, 0, 1, 1], [], []>} : vector<8x64xf32>, vector<64x64xf32>, vector<8x64xf32> -> vector<8x64xf32>
    %17 = arith.addf %14, %16 : vector<8x64xf32>
    %18 = math.tanh %17 : vector<8x64xf32>
    %19 = arith.index_cast %12 : i32 to index
    %c0_17 = arith.constant 0 : index
    %20 = vector.load %arg12[%19, %c0_17] : memref<64x64xf32, #tpu.memory_space<vmem>>, vector<8x64xf32>
    tpu.vector_store %arg12[%19, %c0_17], %18 {strides = array<i32>} : memref<64x64xf32, #tpu.memory_space<vmem>>, vector<8x64xf32>,
    %c0_18 = arith.constant 0 : index
    %c0_19 = arith.constant 0 : index
    %21 = vector.load %arg13[%c0_18, %c0_19] : memref<8x64xf32, #tpu.memory_space<vmem>>, vector<8x64xf32>
    tpu.vector_store %arg13[%c0_18, %c0_19], %18 {strides = array<i32>} : memref<8x64xf32, #tpu.memory_space<vmem>>, vector<8x64xf32>,
    %c1_i32 = arith.constant 1 : i32
    %c8_i32_20 = arith.constant 8 : i32
    %22 = arith.muli %c1_i32, %c8_i32_20 : i32
    %23 = tpu.assume_multiple %22, 8 : i32
    %24 = arith.index_cast %23 : i32 to index
    %c0_21 = arith.constant 0 : index
    %25 = vector.load %arg11[%24, %c0_21] : memref<64x64xf32, #tpu.memory_space<vmem>>, vector<8x64xf32>
    %c0_22 = arith.constant 0 : index
    %c0_23 = arith.constant 0 : index
    %26 = vector.load %arg13[%c0_22, %c0_23] : memref<8x64xf32, #tpu.memory_space<vmem>>, vector<8x64xf32>
    %cst_24 = arith.constant dense<0.000000e+00> : vector<8x64xf32>
    %27 = tpu.matmul %26, %8, %cst_24 {dimension_numbers = #tpu.dot_dimension_numbers<[1], [0], [0], [1], [0, 0, 1, 1], [], []>} : vector<8x64xf32>, vector<64x64xf32>, vector<8x64xf32> -> vector<8x64xf32>
    %28 = arith.addf %25, %27 : vector<8x64xf32>
    %29 = math.tanh %28 : vector<8x64xf32>
    %30 = arith.index_cast %23 : i32 to index
    %c0_25 = arith.constant 0 : index
    %31 = vector.load %arg12[%30, %c0_25] : memref<64x64xf32, #tpu.memory_space<vmem>>, vector<8x64xf32>
    tpu.vector_store %arg12[%30, %c0_25], %29 {strides = array<i32>} : memref<64x64xf32, #tpu.memory_space<vmem>>, vector<8x64xf32>,
    %c0_26 = arith.constant 0 : index
    %c0_27 = arith.constant 0 : index
    %32 = vector.load %arg13[%c0_26, %c0_27] : memref<8x64xf32, #tpu.memory_space<vmem>>, vector<8x64xf32>
    tpu.vector_store %arg13[%c0_26, %c0_27], %29 {strides = array<i32>} : memref<8x64xf32, #tpu.memory_space<vmem>>, vector<8x64xf32>,
    %c2_i32 = arith.constant 2 : i32
    %c8_i32_28 = arith.constant 8 : i32
    %33 = arith.muli %c2_i32, %c8_i32_28 : i32
    %34 = tpu.assume_multiple %33, 8 : i32
    %35 = arith.index_cast %34 : i32 to index
    %c0_29 = arith.constant 0 : index
    %36 = vector.load %arg11[%35, %c0_29] : memref<64x64xf32, #tpu.memory_space<vmem>>, vector<8x64xf32>
    %c0_30 = arith.constant 0 : index
    %c0_31 = arith.constant 0 : index
    %37 = vector.load %arg13[%c0_30, %c0_31] : memref<8x64xf32, #tpu.memory_space<vmem>>, vector<8x64xf32>
    %cst_32 = arith.constant dense<0.000000e+00> : vector<8x64xf32>
    %38 = tpu.matmul %37, %8, %cst_32 {dimension_numbers = #tpu.dot_dimension_numbers<[1], [0], [0], [1], [0, 0, 1, 1], [], []>} : vector<8x64xf32>, vector<64x64xf32>, vector<8x64xf32> -> vector<8x64xf32>
    %39 = arith.addf %36, %38 : vector<8x64xf32>
    %40 = math.tanh %39 : vector<8x64xf32>
    %41 = arith.index_cast %34 : i32 to index
    %c0_33 = arith.constant 0 : index
    %42 = vector.load %arg12[%41, %c0_33] : memref<64x64xf32, #tpu.memory_space<vmem>>, vector<8x64xf32>
    tpu.vector_store %arg12[%41, %c0_33], %40 {strides = array<i32>} : memref<64x64xf32, #tpu.memory_space<vmem>>, vector<8x64xf32>,
    %c0_34 = arith.constant 0 : index
    %c0_35 = arith.constant 0 : index
    %43 = vector.load %arg13[%c0_34, %c0_35] : memref<8x64xf32, #tpu.memory_space<vmem>>, vector<8x64xf32>
    tpu.vector_store %arg13[%c0_34, %c0_35], %40 {strides = array<i32>} : memref<8x64xf32, #tpu.memory_space<vmem>>, vector<8x64xf32>,
    %c3_i32 = arith.constant 3 : i32
    %c8_i32_36 = arith.constant 8 : i32
    %44 = arith.muli %c3_i32, %c8_i32_36 : i32
    %45 = tpu.assume_multiple %44, 8 : i32
    %46 = arith.index_cast %45 : i32 to index
    %c0_37 = arith.constant 0 : index
    %47 = vector.load %arg11[%46, %c0_37] : memref<64x64xf32, #tpu.memory_space<vmem>>, vector<8x64xf32>
    %c0_38 = arith.constant 0 : index
    %c0_39 = arith.constant 0 : index
    %48 = vector.load %arg13[%c0_38, %c0_39] : memref<8x64xf32, #tpu.memory_space<vmem>>, vector<8x64xf32>
    %cst_40 = arith.constant dense<0.000000e+00> : vector<8x64xf32>
    %49 = tpu.matmul %48, %8, %cst_40 {dimension_numbers = #tpu.dot_dimension_numbers<[1], [0], [0], [1], [0, 0, 1, 1], [], []>} : vector<8x64xf32>, vector<64x64xf32>, vector<8x64xf32> -> vector<8x64xf32>
    %50 = arith.addf %47, %49 : vector<8x64xf32>
    %51 = math.tanh %50 : vector<8x64xf32>
    %52 = arith.index_cast %45 : i32 to index
    %c0_41 = arith.constant 0 : index
    %53 = vector.load %arg12[%52, %c0_41] : memref<64x64xf32, #tpu.memory_space<vmem>>, vector<8x64xf32>
    tpu.vector_store %arg12[%52, %c0_41], %51 {strides = array<i32>} : memref<64x64xf32, #tpu.memory_space<vmem>>, vector<8x64xf32>,
    %c0_42 = arith.constant 0 : index
    %c0_43 = arith.constant 0 : index
    %54 = vector.load %arg13[%c0_42, %c0_43] : memref<8x64xf32, #tpu.memory_space<vmem>>, vector<8x64xf32>
    tpu.vector_store %arg13[%c0_42, %c0_43], %51 {strides = array<i32>} : memref<8x64xf32, #tpu.memory_space<vmem>>, vector<8x64xf32>,
    %c4_i32 = arith.constant 4 : i32
    %c8_i32_44 = arith.constant 8 : i32
    %55 = arith.muli %c4_i32, %c8_i32_44 : i32
    %56 = tpu.assume_multiple %55, 8 : i32
    %57 = arith.index_cast %56 : i32 to index
    %c0_45 = arith.constant 0 : index
    %58 = vector.load %arg11[%57, %c0_45] : memref<64x64xf32, #tpu.memory_space<vmem>>, vector<8x64xf32>
    %c0_46 = arith.constant 0 : index
    %c0_47 = arith.constant 0 : index
    %59 = vector.load %arg13[%c0_46, %c0_47] : memref<8x64xf32, #tpu.memory_space<vmem>>, vector<8x64xf32>
    %cst_48 = arith.constant dense<0.000000e+00> : vector<8x64xf32>
    %60 = tpu.matmul %59, %8, %cst_48 {dimension_numbers = #tpu.dot_dimension_numbers<[1], [0], [0], [1], [0, 0, 1, 1], [], []>} : vector<8x64xf32>, vector<64x64xf32>, vector<8x64xf32> -> vector<8x64xf32>
    %61 = arith.addf %58, %60 : vector<8x64xf32>
    %62 = math.tanh %61 : vector<8x64xf32>
    %63 = arith.index_cast %56 : i32 to index
    %c0_49 = arith.constant 0 : index
    %64 = vector.load %arg12[%63, %c0_49] : memref<64x64xf32, #tpu.memory_space<vmem>>, vector<8x64xf32>
    tpu.vector_store %arg12[%63, %c0_49], %62 {strides = array<i32>} : memref<64x64xf32, #tpu.memory_space<vmem>>, vector<8x64xf32>,
    %c0_50 = arith.constant 0 : index
    %c0_51 = arith.constant 0 : index
    %65 = vector.load %arg13[%c0_50, %c0_51] : memref<8x64xf32, #tpu.memory_space<vmem>>, vector<8x64xf32>
    tpu.vector_store %arg13[%c0_50, %c0_51], %62 {strides = array<i32>} : memref<8x64xf32, #tpu.memory_space<vmem>>, vector<8x64xf32>,
    %c5_i32 = arith.constant 5 : i32
    %c8_i32_52 = arith.constant 8 : i32
    %66 = arith.muli %c5_i32, %c8_i32_52 : i32
    %67 = tpu.assume_multiple %66, 8 : i32
    %68 = arith.index_cast %67 : i32 to index
    %c0_53 = arith.constant 0 : index
    %69 = vector.load %arg11[%68, %c0_53] : memref<64x64xf32, #tpu.memory_space<vmem>>, vector<8x64xf32>
    %c0_54 = arith.constant 0 : index
    %c0_55 = arith.constant 0 : index
    %70 = vector.load %arg13[%c0_54, %c0_55] : memref<8x64xf32, #tpu.memory_space<vmem>>, vector<8x64xf32>
    %cst_56 = arith.constant dense<0.000000e+00> : vector<8x64xf32>
    %71 = tpu.matmul %70, %8, %cst_56 {dimension_numbers = #tpu.dot_dimension_numbers<[1], [0], [0], [1], [0, 0, 1, 1], [], []>} : vector<8x64xf32>, vector<64x64xf32>, vector<8x64xf32> -> vector<8x64xf32>
    %72 = arith.addf %69, %71 : vector<8x64xf32>
    %73 = math.tanh %72 : vector<8x64xf32>
    %74 = arith.index_cast %67 : i32 to index
    %c0_57 = arith.constant 0 : index
    %75 = vector.load %arg12[%74, %c0_57] : memref<64x64xf32, #tpu.memory_space<vmem>>, vector<8x64xf32>
    tpu.vector_store %arg12[%74, %c0_57], %73 {strides = array<i32>} : memref<64x64xf32, #tpu.memory_space<vmem>>, vector<8x64xf32>,
    %c0_58 = arith.constant 0 : index
    %c0_59 = arith.constant 0 : index
    %76 = vector.load %arg13[%c0_58, %c0_59] : memref<8x64xf32, #tpu.memory_space<vmem>>, vector<8x64xf32>
    tpu.vector_store %arg13[%c0_58, %c0_59], %73 {strides = array<i32>} : memref<8x64xf32, #tpu.memory_space<vmem>>, vector<8x64xf32>,
    %c6_i32 = arith.constant 6 : i32
    %c8_i32_60 = arith.constant 8 : i32
    %77 = arith.muli %c6_i32, %c8_i32_60 : i32
    %78 = tpu.assume_multiple %77, 8 : i32
    %79 = arith.index_cast %78 : i32 to index
    %c0_61 = arith.constant 0 : index
    %80 = vector.load %arg11[%79, %c0_61] : memref<64x64xf32, #tpu.memory_space<vmem>>, vector<8x64xf32>
    %c0_62 = arith.constant 0 : index
    %c0_63 = arith.constant 0 : index
    %81 = vector.load %arg13[%c0_62, %c0_63] : memref<8x64xf32, #tpu.memory_space<vmem>>, vector<8x64xf32>
    %cst_64 = arith.constant dense<0.000000e+00> : vector<8x64xf32>
    %82 = tpu.matmul %81, %8, %cst_64 {dimension_numbers = #tpu.dot_dimension_numbers<[1], [0], [0], [1], [0, 0, 1, 1], [], []>} : vector<8x64xf32>, vector<64x64xf32>, vector<8x64xf32> -> vector<8x64xf32>
    %83 = arith.addf %80, %82 : vector<8x64xf32>
    %84 = math.tanh %83 : vector<8x64xf32>
    %85 = arith.index_cast %78 : i32 to index
    %c0_65 = arith.constant 0 : index
    %86 = vector.load %arg12[%85, %c0_65] : memref<64x64xf32, #tpu.memory_space<vmem>>, vector<8x64xf32>
    tpu.vector_store %arg12[%85, %c0_65], %84 {strides = array<i32>} : memref<64x64xf32, #tpu.memory_space<vmem>>, vector<8x64xf32>,
    %c0_66 = arith.constant 0 : index
    %c0_67 = arith.constant 0 : index
    %87 = vector.load %arg13[%c0_66, %c0_67] : memref<8x64xf32, #tpu.memory_space<vmem>>, vector<8x64xf32>
    tpu.vector_store %arg13[%c0_66, %c0_67], %84 {strides = array<i32>} : memref<8x64xf32, #tpu.memory_space<vmem>>, vector<8x64xf32>,
    %c7_i32 = arith.constant 7 : i32
    %c8_i32_68 = arith.constant 8 : i32
    %88 = arith.muli %c7_i32, %c8_i32_68 : i32
    %89 = tpu.assume_multiple %88, 8 : i32
    %90 = arith.index_cast %89 : i32 to index
    %c0_69 = arith.constant 0 : index
    %91 = vector.load %arg11[%90, %c0_69] : memref<64x64xf32, #tpu.memory_space<vmem>>, vector<8x64xf32>
    %c0_70 = arith.constant 0 : index
    %c0_71 = arith.constant 0 : index
    %92 = vector.load %arg13[%c0_70, %c0_71] : memref<8x64xf32, #tpu.memory_space<vmem>>, vector<8x64xf32>
    %cst_72 = arith.constant dense<0.000000e+00> : vector<8x64xf32>
    %93 = tpu.matmul %92, %8, %cst_72 {dimension_numbers = #tpu.dot_dimension_numbers<[1], [0], [0], [1], [0, 0, 1, 1], [], []>} : vector<8x64xf32>, vector<64x64xf32>, vector<8x64xf32> -> vector<8x64xf32>
    %94 = arith.addf %91, %93 : vector<8x64xf32>
    %95 = math.tanh %94 : vector<8x64xf32>
    %96 = arith.index_cast %89 : i32 to index
    %c0_73 = arith.constant 0 : index
    %97 = vector.load %arg12[%96, %c0_73] : memref<64x64xf32, #tpu.memory_space<vmem>>, vector<8x64xf32>
    tpu.vector_store %arg12[%96, %c0_73], %95 {strides = array<i32>} : memref<64x64xf32, #tpu.memory_space<vmem>>, vector<8x64xf32>,
    %c0_74 = arith.constant 0 : index
    %c0_75 = arith.constant 0 : index
    %98 = vector.load %arg13[%c0_74, %c0_75] : memref<8x64xf32, #tpu.memory_space<vmem>>, vector<8x64xf32>
    tpu.vector_store %arg13[%c0_74, %c0_75], %95 {strides = array<i32>} : memref<8x64xf32, #tpu.memory_space<vmem>>, vector<8x64xf32>,
    %c8_i32_76 = arith.constant 8 : i32
    %c0_77 = arith.constant 0 : index
    %c0_78 = arith.constant 0 : index
    %99 = vector.load %arg7[%c0_77, %c0_78] : memref<1x64xf32, #tpu.memory_space<vmem>>, vector<1x64xf32>
    %c0_79 = arith.constant 0 : index
    %c0_80 = arith.constant 0 : index
    %100 = vector.load %arg12[%c0_79, %c0_80] : memref<64x64xf32, #tpu.memory_space<vmem>>, vector<64x64xf32>
    %c0_81 = arith.constant 0 : index
    %c0_82 = arith.constant 0 : index
    %101 = vector.load %arg5[%c0_81, %c0_82] : memref<64x64xf32, #tpu.memory_space<vmem>>, vector<64x64xf32>
    %cst_83 = arith.constant dense<0.000000e+00> : vector<64x64xf32>
    %102 = tpu.matmul %100, %101, %cst_83 {dimension_numbers = #tpu.dot_dimension_numbers<[1], [0], [0], [1], [0, 0, 1, 1], [], []>} : vector<64x64xf32>, vector<64x64xf32>, vector<64x64xf32> -> vector<64x64xf32>
    %103 = vector.broadcast %99 : vector<1x64xf32> to vector<64x64xf32>
    %104 = arith.addf %102, %103 : vector<64x64xf32>
    %c0_84 = arith.constant 0 : index
    %c0_85 = arith.constant 0 : index
    %105 = vector.load %arg11[%c0_84, %c0_85] : memref<64x64xf32, #tpu.memory_space<vmem>>, vector<64x64xf32>
    tpu.vector_store %arg11[%c0_84, %c0_85], %104 {strides = array<i32>} : memref<64x64xf32, #tpu.memory_space<vmem>>, vector<64x64xf32>,
    %c0_86 = arith.constant 0 : index
    %c0_87 = arith.constant 0 : index
    %106 = vector.load %arg6[%c0_86, %c0_87] : memref<64x64xf32, #tpu.memory_space<vmem>>, vector<64x64xf32>
    %cst_88 = arith.constant 0.000000e+00 : f32
    %107 = vector.broadcast %cst_88 : f32 to vector<8x64xf32>
    %c0_89 = arith.constant 0 : index
    %c0_90 = arith.constant 0 : index
    %108 = vector.load %arg13[%c0_89, %c0_90] : memref<8x64xf32, #tpu.memory_space<vmem>>, vector<8x64xf32>
    tpu.vector_store %arg13[%c0_89, %c0_90], %107 {strides = array<i32>} : memref<8x64xf32, #tpu.memory_space<vmem>>, vector<8x64xf32>,
    %c0_i32_91 = arith.constant 0 : i32
    %c8_i32_92 = arith.constant 8 : i32
    %109 = arith.muli %c0_i32_91, %c8_i32_92 : i32
    %110 = tpu.assume_multiple %109, 8 : i32
    %111 = arith.index_cast %110 : i32 to index
    %c0_93 = arith.constant 0 : index
    %112 = vector.load %arg11[%111, %c0_93] : memref<64x64xf32, #tpu.memory_space<vmem>>, vector<8x64xf32>
    %c0_94 = arith.constant 0 : index
    %c0_95 = arith.constant 0 : index
    %113 = vector.load %arg13[%c0_94, %c0_95] : memref<8x64xf32, #tpu.memory_space<vmem>>, vector<8x64xf32>
    %cst_96 = arith.constant dense<0.000000e+00> : vector<8x64xf32>
    %114 = tpu.matmul %113, %106, %cst_96 {dimension_numbers = #tpu.dot_dimension_numbers<[1], [0], [0], [1], [0, 0, 1, 1], [], []>} : vector<8x64xf32>, vector<64x64xf32>, vector<8x64xf32> -> vector<8x64xf32>
    %115 = arith.addf %112, %114 : vector<8x64xf32>
    %116 = math.tanh %115 : vector<8x64xf32>
    %117 = arith.index_cast %110 : i32 to index
    %c0_97 = arith.constant 0 : index
    %118 = vector.load %arg12[%117, %c0_97] : memref<64x64xf32, #tpu.memory_space<vmem>>, vector<8x64xf32>
    tpu.vector_store %arg12[%117, %c0_97], %116 {strides = array<i32>} : memref<64x64xf32, #tpu.memory_space<vmem>>, vector<8x64xf32>,
    %c0_98 = arith.constant 0 : index
    %c0_99 = arith.constant 0 : index
    %119 = vector.load %arg13[%c0_98, %c0_99] : memref<8x64xf32, #tpu.memory_space<vmem>>, vector<8x64xf32>
    tpu.vector_store %arg13[%c0_98, %c0_99], %116 {strides = array<i32>} : memref<8x64xf32, #tpu.memory_space<vmem>>, vector<8x64xf32>,
    %c1_i32_100 = arith.constant 1 : i32
    %c8_i32_101 = arith.constant 8 : i32
    %120 = arith.muli %c1_i32_100, %c8_i32_101 : i32
    %121 = tpu.assume_multiple %120, 8 : i32
    %122 = arith.index_cast %121 : i32 to index
    %c0_102 = arith.constant 0 : index
    %123 = vector.load %arg11[%122, %c0_102] : memref<64x64xf32, #tpu.memory_space<vmem>>, vector<8x64xf32>
    %c0_103 = arith.constant 0 : index
    %c0_104 = arith.constant 0 : index
    %124 = vector.load %arg13[%c0_103, %c0_104] : memref<8x64xf32, #tpu.memory_space<vmem>>, vector<8x64xf32>
    %cst_105 = arith.constant dense<0.000000e+00> : vector<8x64xf32>
    %125 = tpu.matmul %124, %106, %cst_105 {dimension_numbers = #tpu.dot_dimension_numbers<[1], [0], [0], [1], [0, 0, 1, 1], [], []>} : vector<8x64xf32>, vector<64x64xf32>, vector<8x64xf32> -> vector<8x64xf32>
    %126 = arith.addf %123, %125 : vector<8x64xf32>
    %127 = math.tanh %126 : vector<8x64xf32>
    %128 = arith.index_cast %121 : i32 to index
    %c0_106 = arith.constant 0 : index
    %129 = vector.load %arg12[%128, %c0_106] : memref<64x64xf32, #tpu.memory_space<vmem>>, vector<8x64xf32>
    tpu.vector_store %arg12[%128, %c0_106], %127 {strides = array<i32>} : memref<64x64xf32, #tpu.memory_space<vmem>>, vector<8x64xf32>,
    %c0_107 = arith.constant 0 : index
    %c0_108 = arith.constant 0 : index
    %130 = vector.load %arg13[%c0_107, %c0_108] : memref<8x64xf32, #tpu.memory_space<vmem>>, vector<8x64xf32>
    tpu.vector_store %arg13[%c0_107, %c0_108], %127 {strides = array<i32>} : memref<8x64xf32, #tpu.memory_space<vmem>>, vector<8x64xf32>,
    %c2_i32_109 = arith.constant 2 : i32
    %c8_i32_110 = arith.constant 8 : i32
    %131 = arith.muli %c2_i32_109, %c8_i32_110 : i32
    %132 = tpu.assume_multiple %131, 8 : i32
    %133 = arith.index_cast %132 : i32 to index
    %c0_111 = arith.constant 0 : index
    %134 = vector.load %arg11[%133, %c0_111] : memref<64x64xf32, #tpu.memory_space<vmem>>, vector<8x64xf32>
    %c0_112 = arith.constant 0 : index
    %c0_113 = arith.constant 0 : index
    %135 = vector.load %arg13[%c0_112, %c0_113] : memref<8x64xf32, #tpu.memory_space<vmem>>, vector<8x64xf32>
    %cst_114 = arith.constant dense<0.000000e+00> : vector<8x64xf32>
    %136 = tpu.matmul %135, %106, %cst_114 {dimension_numbers = #tpu.dot_dimension_numbers<[1], [0], [0], [1], [0, 0, 1, 1], [], []>} : vector<8x64xf32>, vector<64x64xf32>, vector<8x64xf32> -> vector<8x64xf32>
    %137 = arith.addf %134, %136 : vector<8x64xf32>
    %138 = math.tanh %137 : vector<8x64xf32>
    %139 = arith.index_cast %132 : i32 to index
    %c0_115 = arith.constant 0 : index
    %140 = vector.load %arg12[%139, %c0_115] : memref<64x64xf32, #tpu.memory_space<vmem>>, vector<8x64xf32>
    tpu.vector_store %arg12[%139, %c0_115], %138 {strides = array<i32>} : memref<64x64xf32, #tpu.memory_space<vmem>>, vector<8x64xf32>,
    %c0_116 = arith.constant 0 : index
    %c0_117 = arith.constant 0 : index
    %141 = vector.load %arg13[%c0_116, %c0_117] : memref<8x64xf32, #tpu.memory_space<vmem>>, vector<8x64xf32>
    tpu.vector_store %arg13[%c0_116, %c0_117], %138 {strides = array<i32>} : memref<8x64xf32, #tpu.memory_space<vmem>>, vector<8x64xf32>,
    %c3_i32_118 = arith.constant 3 : i32
    %c8_i32_119 = arith.constant 8 : i32
    %142 = arith.muli %c3_i32_118, %c8_i32_119 : i32
    %143 = tpu.assume_multiple %142, 8 : i32
    %144 = arith.index_cast %143 : i32 to index
    %c0_120 = arith.constant 0 : index
    %145 = vector.load %arg11[%144, %c0_120] : memref<64x64xf32, #tpu.memory_space<vmem>>, vector<8x64xf32>
    %c0_121 = arith.constant 0 : index
    %c0_122 = arith.constant 0 : index
    %146 = vector.load %arg13[%c0_121, %c0_122] : memref<8x64xf32, #tpu.memory_space<vmem>>, vector<8x64xf32>
    %cst_123 = arith.constant dense<0.000000e+00> : vector<8x64xf32>
    %147 = tpu.matmul %146, %106, %cst_123 {dimension_numbers = #tpu.dot_dimension_numbers<[1], [0], [0], [1], [0, 0, 1, 1], [], []>} : vector<8x64xf32>, vector<64x64xf32>, vector<8x64xf32> -> vector<8x64xf32>
    %148 = arith.addf %145, %147 : vector<8x64xf32>
    %149 = math.tanh %148 : vector<8x64xf32>
    %150 = arith.index_cast %143 : i32 to index
    %c0_124 = arith.constant 0 : index
    %151 = vector.load %arg12[%150, %c0_124] : memref<64x64xf32, #tpu.memory_space<vmem>>, vector<8x64xf32>
    tpu.vector_store %arg12[%150, %c0_124], %149 {strides = array<i32>} : memref<64x64xf32, #tpu.memory_space<vmem>>, vector<8x64xf32>,
    %c0_125 = arith.constant 0 : index
    %c0_126 = arith.constant 0 : index
    %152 = vector.load %arg13[%c0_125, %c0_126] : memref<8x64xf32, #tpu.memory_space<vmem>>, vector<8x64xf32>
    tpu.vector_store %arg13[%c0_125, %c0_126], %149 {strides = array<i32>} : memref<8x64xf32, #tpu.memory_space<vmem>>, vector<8x64xf32>,
    %c4_i32_127 = arith.constant 4 : i32
    %c8_i32_128 = arith.constant 8 : i32
    %153 = arith.muli %c4_i32_127, %c8_i32_128 : i32
    %154 = tpu.assume_multiple %153, 8 : i32
    %155 = arith.index_cast %154 : i32 to index
    %c0_129 = arith.constant 0 : index
    %156 = vector.load %arg11[%155, %c0_129] : memref<64x64xf32, #tpu.memory_space<vmem>>, vector<8x64xf32>
    %c0_130 = arith.constant 0 : index
    %c0_131 = arith.constant 0 : index
    %157 = vector.load %arg13[%c0_130, %c0_131] : memref<8x64xf32, #tpu.memory_space<vmem>>, vector<8x64xf32>
    %cst_132 = arith.constant dense<0.000000e+00> : vector<8x64xf32>
    %158 = tpu.matmul %157, %106, %cst_132 {dimension_numbers = #tpu.dot_dimension_numbers<[1], [0], [0], [1], [0, 0, 1, 1], [], []>} : vector<8x64xf32>, vector<64x64xf32>, vector<8x64xf32> -> vector<8x64xf32>
    %159 = arith.addf %156, %158 : vector<8x64xf32>
    %160 = math.tanh %159 : vector<8x64xf32>
    %161 = arith.index_cast %154 : i32 to index
    %c0_133 = arith.constant 0 : index
    %162 = vector.load %arg12[%161, %c0_133] : memref<64x64xf32, #tpu.memory_space<vmem>>, vector<8x64xf32>
    tpu.vector_store %arg12[%161, %c0_133], %160 {strides = array<i32>} : memref<64x64xf32, #tpu.memory_space<vmem>>, vector<8x64xf32>,
    %c0_134 = arith.constant 0 : index
    %c0_135 = arith.constant 0 : index
    %163 = vector.load %arg13[%c0_134, %c0_135] : memref<8x64xf32, #tpu.memory_space<vmem>>, vector<8x64xf32>
    tpu.vector_store %arg13[%c0_134, %c0_135], %160 {strides = array<i32>} : memref<8x64xf32, #tpu.memory_space<vmem>>, vector<8x64xf32>,
    %c5_i32_136 = arith.constant 5 : i32
    %c8_i32_137 = arith.constant 8 : i32
    %164 = arith.muli %c5_i32_136, %c8_i32_137 : i32
    %165 = tpu.assume_multiple %164, 8 : i32
    %166 = arith.index_cast %165 : i32 to index
    %c0_138 = arith.constant 0 : index
    %167 = vector.load %arg11[%166, %c0_138] : memref<64x64xf32, #tpu.memory_space<vmem>>, vector<8x64xf32>
    %c0_139 = arith.constant 0 : index
    %c0_140 = arith.constant 0 : index
    %168 = vector.load %arg13[%c0_139, %c0_140] : memref<8x64xf32, #tpu.memory_space<vmem>>, vector<8x64xf32>
    %cst_141 = arith.constant dense<0.000000e+00> : vector<8x64xf32>
    %169 = tpu.matmul %168, %106, %cst_141 {dimension_numbers = #tpu.dot_dimension_numbers<[1], [0], [0], [1], [0, 0, 1, 1], [], []>} : vector<8x64xf32>, vector<64x64xf32>, vector<8x64xf32> -> vector<8x64xf32>
    %170 = arith.addf %167, %169 : vector<8x64xf32>
    %171 = math.tanh %170 : vector<8x64xf32>
    %172 = arith.index_cast %165 : i32 to index
    %c0_142 = arith.constant 0 : index
    %173 = vector.load %arg12[%172, %c0_142] : memref<64x64xf32, #tpu.memory_space<vmem>>, vector<8x64xf32>
    tpu.vector_store %arg12[%172, %c0_142], %171 {strides = array<i32>} : memref<64x64xf32, #tpu.memory_space<vmem>>, vector<8x64xf32>,
    %c0_143 = arith.constant 0 : index
    %c0_144 = arith.constant 0 : index
    %174 = vector.load %arg13[%c0_143, %c0_144] : memref<8x64xf32, #tpu.memory_space<vmem>>, vector<8x64xf32>
    tpu.vector_store %arg13[%c0_143, %c0_144], %171 {strides = array<i32>} : memref<8x64xf32, #tpu.memory_space<vmem>>, vector<8x64xf32>,
    %c6_i32_145 = arith.constant 6 : i32
    %c8_i32_146 = arith.constant 8 : i32
    %175 = arith.muli %c6_i32_145, %c8_i32_146 : i32
    %176 = tpu.assume_multiple %175, 8 : i32
    %177 = arith.index_cast %176 : i32 to index
    %c0_147 = arith.constant 0 : index
    %178 = vector.load %arg11[%177, %c0_147] : memref<64x64xf32, #tpu.memory_space<vmem>>, vector<8x64xf32>
    %c0_148 = arith.constant 0 : index
    %c0_149 = arith.constant 0 : index
    %179 = vector.load %arg13[%c0_148, %c0_149] : memref<8x64xf32, #tpu.memory_space<vmem>>, vector<8x64xf32>
    %cst_150 = arith.constant dense<0.000000e+00> : vector<8x64xf32>
    %180 = tpu.matmul %179, %106, %cst_150 {dimension_numbers = #tpu.dot_dimension_numbers<[1], [0], [0], [1], [0, 0, 1, 1], [], []>} : vector<8x64xf32>, vector<64x64xf32>, vector<8x64xf32> -> vector<8x64xf32>
    %181 = arith.addf %178, %180 : vector<8x64xf32>
    %182 = math.tanh %181 : vector<8x64xf32>
    %183 = arith.index_cast %176 : i32 to index
    %c0_151 = arith.constant 0 : index
    %184 = vector.load %arg12[%183, %c0_151] : memref<64x64xf32, #tpu.memory_space<vmem>>, vector<8x64xf32>
    tpu.vector_store %arg12[%183, %c0_151], %182 {strides = array<i32>} : memref<64x64xf32, #tpu.memory_space<vmem>>, vector<8x64xf32>,
    %c0_152 = arith.constant 0 : index
    %c0_153 = arith.constant 0 : index
    %185 = vector.load %arg13[%c0_152, %c0_153] : memref<8x64xf32, #tpu.memory_space<vmem>>, vector<8x64xf32>
    tpu.vector_store %arg13[%c0_152, %c0_153], %182 {strides = array<i32>} : memref<8x64xf32, #tpu.memory_space<vmem>>, vector<8x64xf32>,
    %c7_i32_154 = arith.constant 7 : i32
    %c8_i32_155 = arith.constant 8 : i32
    %186 = arith.muli %c7_i32_154, %c8_i32_155 : i32
    %187 = tpu.assume_multiple %186, 8 : i32
    %188 = arith.index_cast %187 : i32 to index
    %c0_156 = arith.constant 0 : index
    %189 = vector.load %arg11[%188, %c0_156] : memref<64x64xf32, #tpu.memory_space<vmem>>, vector<8x64xf32>
    %c0_157 = arith.constant 0 : index
    %c0_158 = arith.constant 0 : index
    %190 = vector.load %arg13[%c0_157, %c0_158] : memref<8x64xf32, #tpu.memory_space<vmem>>, vector<8x64xf32>
    %cst_159 = arith.constant dense<0.000000e+00> : vector<8x64xf32>
    %191 = tpu.matmul %190, %106, %cst_159 {dimension_numbers = #tpu.dot_dimension_numbers<[1], [0], [0], [1], [0, 0, 1, 1], [], []>} : vector<8x64xf32>, vector<64x64xf32>, vector<8x64xf32> -> vector<8x64xf32>
    %192 = arith.addf %189, %191 : vector<8x64xf32>
    %193 = math.tanh %192 : vector<8x64xf32>
    %194 = arith.index_cast %187 : i32 to index
    %c0_160 = arith.constant 0 : index
    %195 = vector.load %arg12[%194, %c0_160] : memref<64x64xf32, #tpu.memory_space<vmem>>, vector<8x64xf32>
    tpu.vector_store %arg12[%194, %c0_160], %193 {strides = array<i32>} : memref<64x64xf32, #tpu.memory_space<vmem>>, vector<8x64xf32>,
    %c0_161 = arith.constant 0 : index
    %c0_162 = arith.constant 0 : index
    %196 = vector.load %arg13[%c0_161, %c0_162] : memref<8x64xf32, #tpu.memory_space<vmem>>, vector<8x64xf32>
    tpu.vector_store %arg13[%c0_161, %c0_162], %193 {strides = array<i32>} : memref<8x64xf32, #tpu.memory_space<vmem>>, vector<8x64xf32>,
    %c8_i32_163 = arith.constant 8 : i32
    %c0_164 = arith.constant 0 : index
    %c0_165 = arith.constant 0 : index
    %197 = vector.load %arg12[%c0_164, %c0_165] : memref<64x64xf32, #tpu.memory_space<vmem>>, vector<64x64xf32>
    %c0_166 = arith.constant 0 : index
    %c0_167 = arith.constant 0 : index
    %198 = vector.load %arg8[%c0_166, %c0_167] : memref<64x128xf32, #tpu.memory_space<vmem>>, vector<64x128xf32>
    %cst_168 = arith.constant dense<0.000000e+00> : vector<64x128xf32>
    %199 = tpu.matmul %197, %198, %cst_168 {dimension_numbers = #tpu.dot_dimension_numbers<[1], [0], [0], [1], [0, 0, 1, 1], [], []>} : vector<64x64xf32>, vector<64x128xf32>, vector<64x128xf32> -> vector<64x128xf32>
    %c0_169 = arith.constant 0 : index
    %c0_170 = arith.constant 0 : index
    %200 = vector.load %arg9[%c0_169, %c0_170] : memref<1x128xf32, #tpu.memory_space<vmem>>, vector<1x128xf32>
    %201 = vector.broadcast %200 : vector<1x128xf32> to vector<64x128xf32>
    %202 = arith.addf %199, %201 : vector<64x128xf32>
    %c0_171 = arith.constant 0 : index
    %c0_172 = arith.constant 0 : index
    %c0_173 = arith.constant 0 : index
    %203 = vector.load %arg10[%c0_171, %c0_172, %c0_173] : memref<1x64x128xf32, #tpu.memory_space<vmem>>, vector<1x64x128xf32>
    %204 = vector.shape_cast %203 : vector<1x64x128xf32> to vector<64x128xf32>
    %205 = vector.shape_cast %202 : vector<64x128xf32> to vector<1x64x128xf32>
    tpu.vector_store %arg10[%c0_171, %c0_172, %c0_173], %205 {strides = array<i32>} : memref<1x64x128xf32, #tpu.memory_space<vmem>>, vector<1x64x128xf32>,
    return
  }
  func.func @transform_0(%arg0: i32) -> (i32, i32, i32) {
    %c0_i32 = arith.constant 0 : i32
    %c0_i32_0 = arith.constant 0 : i32
    %c0_i32_1 = arith.constant 0 : i32
    return %arg0, %c0_i32, %c0_i32_0 : i32, i32, i32
  }
  func.func @transform_1(%arg0: i32) -> (i32, i32) {
    %c0_i32 = arith.constant 0 : i32
    %c0_i32_0 = arith.constant 0 : i32
    %c0_i32_1 = arith.constant 0 : i32
    return %c0_i32, %c0_i32_0 : i32, i32
  }
  func.func @transform_2(%arg0: i32) -> (i32, i32) {
    %c0_i32 = arith.constant 0 : i32
    %c0_i32_0 = arith.constant 0 : i32
    %c0_i32_1 = arith.constant 0 : i32
    return %c0_i32, %c0_i32_0 : i32, i32
  }
  func.func @transform_3(%arg0: i32) -> (i32, i32) {
    %c0_i32 = arith.constant 0 : i32
    %c0_i32_0 = arith.constant 0 : i32
    %c0_i32_1 = arith.constant 0 : i32
    return %c0_i32, %c0_i32_0 : i32, i32
  }
  func.func @transform_4(%arg0: i32) -> (i32, i32) {
    %c0_i32 = arith.constant 0 : i32
    %c0_i32_0 = arith.constant 0 : i32
    %c0_i32_1 = arith.constant 0 : i32
    return %c0_i32, %c0_i32_0 : i32, i32
  }
  func.func @transform_5(%arg0: i32) -> (i32, i32) {
    %c0_i32 = arith.constant 0 : i32
    %c0_i32_0 = arith.constant 0 : i32
    %c0_i32_1 = arith.constant 0 : i32
    return %c0_i32, %c0_i32_0 : i32, i32
  }
  func.func @transform_6(%arg0: i32) -> (i32, i32) {
    %c0_i32 = arith.constant 0 : i32
    %c0_i32_0 = arith.constant 0 : i32
    %c0_i32_1 = arith.constant 0 : i32
    return %c0_i32, %c0_i32_0 : i32, i32
  }
  func.func @transform_7(%arg0: i32) -> (i32, i32) {
    %c0_i32 = arith.constant 0 : i32
    %c0_i32_0 = arith.constant 0 : i32
    %c0_i32_1 = arith.constant 0 : i32
    return %c0_i32, %c0_i32_0 : i32, i32
  }
  func.func @transform_8(%arg0: i32) -> (i32, i32) {
    %c0_i32 = arith.constant 0 : i32
    %c0_i32_0 = arith.constant 0 : i32
    %c0_i32_1 = arith.constant 0 : i32
    return %c0_i32, %c0_i32_0 : i32, i32
  }
  func.func @transform_9(%arg0: i32) -> (i32, i32, i32) {
    %c0_i32 = arith.constant 0 : i32
    %c0_i32_0 = arith.constant 0 : i32
    %c0_i32_1 = arith.constant 0 : i32
    return %arg0, %c0_i32, %c0_i32_0 : i32, i32, i32
  }
}

</mosaic_0001>

<llo_original>
// kernel: tpu_custom_call.1
$region0: #{tpu_custom_call.1}
  #allocation0 [shape = 'u32[]', space=smem, size = 0x4, offset = 0x4, fixed_abs, tag = 'smem constant byte address 0x4 - core index']
  #allocation1 [shape = 'u32[144,128]{1,0:T(1,128)}', space=vmem, size = 0x12000, scoped, tag = 'internal scratch']
  #allocation2 [shape = 'f32[64,64]{1,0:T(8,128)}', space=vmem, size = 0x8000, scoped, tag = 'scratch operand']
  #allocation3 [shape = 'f32[64,64]{1,0:T(8,128)}', space=vmem, size = 0x8000, scoped, tag = 'scratch operand']
  #allocation4 [shape = 'f32[8,64]{1,0:T(8,128)}', space=vmem, size = 0x1000, scoped, tag = 'scratch operand']
  %s0 = inlined_call_operand.hbm [shape: f32[1,64,64], index: 0, kind: input, shape index: {}]
  %s1 = inlined_call_operand.hbm [shape: f32[64,64], index: 1, kind: input, shape index: {}]
  %s2 = inlined_call_operand.hbm [shape: f32[64,64], index: 2, kind: input, shape index: {}]
  %s3 = inlined_call_operand.vmem [shape: f32[1,64], index: 3, kind: input, shape index: {}]
  %s4 = inlined_call_operand.hbm [shape: f32[64,64], index: 4, kind: input, shape index: {}]
  %s5 = inlined_call_operand.hbm [shape: f32[64,64], index: 5, kind: input, shape index: {}]
  %s6 = inlined_call_operand.vmem [shape: f32[1,64], index: 6, kind: input, shape index: {}]
  %s7 = inlined_call_operand.hbm [shape: f32[64,128], index: 7, kind: input, shape index: {}]
  %s8 = inlined_call_operand.vmem [shape: f32[1,128], index: 8, kind: input, shape index: {}]
  %s9 = inlined_call_operand.hbm [shape: f32[1,64,128], index: 9, kind: output, shape index: {}]
  %s10 = sld [smem:[#allocation0]]
  $region70: #{tpu_custom_call.1} parent=0
    _
  %s12 = ssub.s32 1, %s10
  %s13 = scalar_select 0, %s12, %s10
  $region1: #{tpu_custom_call.1} parent=0
    #allocation5 [shape = 'u8[32768]{0}', space=vmem, size = 0x8000, scoped, tag = 'input window, operand 0, single buffered']
    #allocation6 [shape = 's32[1]{0}', space=sflag, size = 0x4, scoped, tag = 'scoped memory for tpu_custom_call.1']
    #allocation7 [shape = 's32[1]{0}', space=sflag, size = 0x4, scoped, tag = 'scoped memory for tpu_custom_call.1']
    #allocation8 [shape = 'u8[32768]{0}', space=vmem, size = 0x8000, scoped, tag = 'input window, operand 1, single buffered']
    #allocation9 [shape = 's32[1]{0}', space=sflag, size = 0x4, scoped, tag = 'scoped memory for tpu_custom_call.1']
    #allocation10 [shape = 'u8[32768]{0}', space=vmem, size = 0x8000, scoped, tag = 'input window, operand 2, single buffered']
    #allocation11 [shape = 'u8[32768]{0}', space=vmem, size = 0x8000, scoped, tag = 'input window, operand 4, single buffered']
    #allocation12 [shape = 's32[1]{0}', space=sflag, size = 0x4, scoped, tag = 'scoped memory for tpu_custom_call.1']
    #allocation13 [shape = 'u8[32768]{0}', space=vmem, size = 0x8000, scoped, tag = 'input window, operand 5, single buffered']
    #allocation14 [shape = 'u8[32768]{0}', space=vmem, size = 0x8000, scoped, tag = 'input window, operand 7, single buffered']
    #allocation15 [shape = 's32[1]{0}', space=sflag, size = 0x4, scoped, tag = 'scoped memory for tpu_custom_call.1']
    #allocation16 [shape = 'u8[32768]{0}', space=vmem, size = 0x8000, scoped, tag = 'output window, operand 0, single buffered']
    %14 = vsyncpa [#allocation6], 0
    %15 = vsyncpa [#allocation9], 0
    %16 = vsyncpa [#allocation12], 0
    %17 = vsyncpa [#allocation15], 0
    %18 = vsyncpa [#allocation7], 0
    // Predicated region
    $region2: #{tpu_custom_call.1} parent=1 // pred_check
      _
    $region3: #{tpu_custom_call.1} parent=1 // pred_check_branch
      %20 = sbr.rel (0) target = $region5
    $region4: #{tpu_custom_call.1} parent=1 // pred_region
      %s22 = ssub.s32 1024, 1024
      %23 = vsyncadd [#allocation6], %s22
      %s24 = sshll.u32 [#allocation5], 4
      %s25 = int_to_ptr.vmem [resolvable:$true] %s24
      %30 = dma.hbm_to_vmem [thread:$0]  %s0, 1024, %s25, [#allocation6], 128, 128, 8
    $region5: #{tpu_custom_call.1} parent=1 // pred_fallthru
      _
    // Predicated region
    $region6: #{tpu_custom_call.1} parent=1 // pred_check
      _
    $region7: #{tpu_custom_call.1} parent=1 // pred_check_branch
      %32 = sbr.rel (0) target = $region9
    $region8: #{tpu_custom_call.1} parent=1 // pred_region
      %s34 = ssub.s32 1024, 1024
      %35 = vsyncadd [#allocation9], %s34
      %s36 = sshll.u32 [#allocation8], 4
      %s37 = int_to_ptr.vmem [resolvable:$true] %s36
      %42 = dma.hbm_to_vmem [thread:$0]  %s1, 1024, %s37, [#allocation9], 128, 128, 8
    $region9: #{tpu_custom_call.1} parent=1 // pred_fallthru
      _
    // Predicated region
    $region10: #{tpu_custom_call.1} parent=1 // pred_check
      _
    $region11: #{tpu_custom_call.1} parent=1 // pred_check_branch
      %44 = sbr.rel (0) target = $region13
    $region12: #{tpu_custom_call.1} parent=1 // pred_region
      %s46 = ssub.s32 1024, 1024
      %47 = vsyncadd [#allocation9], %s46
      %s48 = sshll.u32 [#allocation10], 4
      %s49 = int_to_ptr.vmem [resolvable:$true] %s48
      %54 = dma.hbm_to_vmem [thread:$0]  %s2, 1024, %s49, [#allocation9], 128, 128, 8
    $region13: #{tpu_custom_call.1} parent=1 // pred_fallthru
      _
    // Predicated region
    $region14: #{tpu_custom_call.1} parent=1 // pred_check
      _
    $region15: #{tpu_custom_call.1} parent=1 // pred_check_branch
      %56 = sbr.rel (0) target = $region17
    $region16: #{tpu_custom_call.1} parent=1 // pred_region
      _
    $region17: #{tpu_custom_call.1} parent=1 // pred_fallthru
      _
    // Predicated region
    $region18: #{tpu_custom_call.1} parent=1 // pred_check
      _
    $region19: #{tpu_custom_call.1} parent=1 // pred_check_branch
      %58 = sbr.rel (0) target = $region21
    $region20: #{tpu_custom_call.1} parent=1 // pred_region
      %s60 = ssub.s32 1024, 1024
      %61 = vsyncadd [#allocation12], %s60
      %s62 = sshll.u32 [#allocation11], 4
      %s63 = int_to_ptr.vmem [resolvable:$true] %s62
      %68 = dma.hbm_to_vmem [thread:$0]  %s4, 1024, %s63, [#allocation12], 128, 128, 8
    $region21: #{tpu_custom_call.1} parent=1 // pred_fallthru
      _
    // Predicated region
    $region22: #{tpu_custom_call.1} parent=1 // pred_check
      _
    $region23: #{tpu_custom_call.1} parent=1 // pred_check_branch
      %70 = sbr.rel (0) target = $region25
    $region24: #{tpu_custom_call.1} parent=1 // pred_region
      %s72 = ssub.s32 1024, 1024
      %73 = vsyncadd [#allocation12], %s72
      %s74 = sshll.u32 [#allocation13], 4
      %s75 = int_to_ptr.vmem [resolvable:$true] %s74
      %80 = dma.hbm_to_vmem [thread:$0]  %s5, 1024, %s75, [#allocation12], 128, 128, 8
    $region25: #{tpu_custom_call.1} parent=1 // pred_fallthru
      _
    // Predicated region
    $region26: #{tpu_custom_call.1} parent=1 // pred_check
      _
    $region27: #{tpu_custom_call.1} parent=1 // pred_check_branch
      %82 = sbr.rel (0) target = $region29
    $region28: #{tpu_custom_call.1} parent=1 // pred_region
      _
    $region29: #{tpu_custom_call.1} parent=1 // pred_fallthru
      _
    // Predicated region
    $region30: #{tpu_custom_call.1} parent=1 // pred_check
      _
    $region31: #{tpu_custom_call.1} parent=1 // pred_check_branch
      %84 = sbr.rel (0) target = $region33
    $region32: #{tpu_custom_call.1} parent=1 // pred_region
      %s86 = ssub.s32 1024, 1024
      %87 = vsyncadd [#allocation15], %s86
      %s88 = sshll.u32 [#allocation14], 4
      %s89 = int_to_ptr.vmem [resolvable:$true] %s88
      %94 = dma.hbm_to_vmem [thread:$0]  %s7, 1024, %s89, [#allocation15], 128, 128, 8
    $region33: #{tpu_custom_call.1} parent=1 // pred_fallthru
      _
    // Predicated region
    $region34: #{tpu_custom_call.1} parent=1 // pred_check
      _
    $region35: #{tpu_custom_call.1} parent=1 // pred_check_branch
      %96 = sbr.rel (0) target = $region37
    $region36: #{tpu_custom_call.1} parent=1 // pred_region
      _
    $region37: #{tpu_custom_call.1} parent=1 // pred_fallthru
      _
    // Predicated region
    $region38: #{tpu_custom_call.1} parent=1 // pred_check
      _
    $region39: #{tpu_custom_call.1} parent=1 // pred_check_branch
      %98 = sbr.rel (0) target = $region41
    $region40: #{tpu_custom_call.1} parent=1 // pred_region
      %99 = dma.done [#allocation6], 1024
    $region41: #{tpu_custom_call.1} parent=1 // pred_fallthru
      _
    // Predicated region
    $region42: #{tpu_custom_call.1} parent=1 // pred_check
      _
    $region43: #{tpu_custom_call.1} parent=1 // pred_check_branch
      %101 = sbr.rel (0) target = $region45
    $region44: #{tpu_custom_call.1} parent=1 // pred_region
      %102 = dma.done [#allocation9], 1024
    $region45: #{tpu_custom_call.1} parent=1 // pred_fallthru
      _
    // Predicated region
    $region46: #{tpu_custom_call.1} parent=1 // pred_check
      _
    $region47: #{tpu_custom_call.1} parent=1 // pred_check_branch
      %104 = sbr.rel (0) target = $region49
    $region48: #{tpu_custom_call.1} parent=1 // pred_region
      %105 = dma.done [#allocation9], 1024
    $region49: #{tpu_custom_call.1} parent=1 // pred_fallthru
      _
    // Predicated region
    $region50: #{tpu_custom_call.1} parent=1 // pred_check
      _
    $region51: #{tpu_custom_call.1} parent=1 // pred_check_branch
      %107 = sbr.rel (0) target = $region53
    $region52: #{tpu_custom_call.1} parent=1 // pred_region
      %108 = dma.done [#allocation12], 1024
    $region53: #{tpu_custom_call.1} parent=1 // pred_fallthru
      _
    // Predicated region
    $region54: #{tpu_custom_call.1} parent=1 // pred_check
      _
    $region55: #{tpu_custom_call.1} parent=1 // pred_check_branch
      %110 = sbr.rel (0) target = $region57
    $region56: #{tpu_custom_call.1} parent=1 // pred_region
      %111 = dma.done [#allocation12], 1024
    $region57: #{tpu_custom_call.1} parent=1 // pred_fallthru
      _
    // Predicated region
    $region58: #{tpu_custom_call.1} parent=1 // pred_check
      _
    $region59: #{tpu_custom_call.1} parent=1 // pred_check_branch
      %113 = sbr.rel (0) target = $region61
    $region60: #{tpu_custom_call.1} parent=1 // pred_region
      %114 = dma.done [#allocation15], 1024
    $region61: #{tpu_custom_call.1} parent=1 // pred_fallthru
      _
    %v115 = vld [vmem:[%s3] sm:$0x1]
    %v116 = vld [vmem:[#allocation5] sm:$0xff]
    %v117 = vld [vmem:[#allocation5 + $0x8] sm:$0xff]
    %v118 = vld [vmem:[#allocation5 + $0x10] sm:$0xff]
    %v119 = vld [vmem:[#allocation5 + $0x18] sm:$0xff]
    %v120 = vld [vmem:[#allocation5 + $0x20] sm:$0xff]
    %v121 = vld [vmem:[#allocation5 + $0x28] sm:$0xff]
    %v122 = vld [vmem:[#allocation5 + $0x30] sm:$0xff]
    %v123 = vld [vmem:[#allocation5 + $0x38] sm:$0xff]
    %v124 = vld [vmem:[#allocation8] sm:$0xff]
    %v125 = vld [vmem:[#allocation8 + $0x8] sm:$0xff]
    %v126 = vld [vmem:[#allocation8 + $0x10] sm:$0xff]
    %v127 = vld [vmem:[#allocation8 + $0x18] sm:$0xff]
    %v128 = vld [vmem:[#allocation8 + $0x20] sm:$0xff]
    %v129 = vld [vmem:[#allocation8 + $0x28] sm:$0xff]
    %v130 = vld [vmem:[#allocation8 + $0x30] sm:$0xff]
    %v131 = vld [vmem:[#allocation8 + $0x38] sm:$0xff]
    %v133 = vlaneseq
    %v134 = vshrl.u32 %v133, 7
    %v135 = vsub.s32 0, %v134
    %v136 = vrot.slane %v115, %v135
    %vm138 = vcmask 523264
    %v140 = vsel %vm138, %v116, 0
    %v143 = vsel %vm138, %v117, 0
    %v146 = vsel %vm138, %v118, 0
    %v149 = vsel %vm138, %v119, 0
    %v152 = vsel %vm138, %v120, 0
    %v155 = vsel %vm138, %v121, 0
    %v158 = vsel %vm138, %v122, 0
    %v161 = vsel %vm138, %v123, 0
    %163 = vmatprep.subr.mxu0 0.0
    %164 = vmatpush1.msra.mxu0 0.0
    %165 = vmatprep.subr.mxu0 0.0
    %166 = vmatpush1.msra.mxu0 0.0
    %167 = vmatprep.subr.mxu0 0.0
    %168 = vmatpush1.msra.mxu0 0.0
    %169 = vmatprep.subr.mxu0 0.0
    %170 = vmatpush1.msra.mxu0 0.0
    %171 = vmatprep.subr.mxu0 0.0
    %172 = vmatpush1.msra.mxu0 0.0
    %173 = vmatprep.subr.mxu0 0.0
    %174 = vmatpush1.msra.mxu0 0.0
    %175 = vmatprep.subr.mxu0 0.0
    %176 = vmatpush1.msra.mxu0 0.0
    %177 = vmatprep.subr.mxu0 0.0
    %178 = vmatpush1.msra.mxu0 0.0
    %179 = vmatprep.subr.mxu0 0.0
    %180 = vmatpush1.msra.mxu0 %v131
    %181 = vmatprep.subr.mxu0 0.0
    %182 = vmatpush1.msra.mxu0 %v130
    %183 = vmatprep.subr.mxu0 0.0
    %184 = vmatpush1.msra.mxu0 %v129
    %185 = vmatprep.subr.mxu0 0.0
    %186 = vmatpush1.msra.mxu0 %v128
    %187 = vmatprep.subr.mxu0 0.0
    %188 = vmatpush1.msra.mxu0 %v127
    %189 = vmatprep.subr.mxu0 0.0
    %190 = vmatpush1.msra.mxu0 %v126
    %191 = vmatprep.subr.mxu0 0.0
    %192 = vmatpush1.msra.mxu0 %v125
    %193 = vmatprep.subr.mxu0 0.0
    %194 = vmatpush1.msra.mxu0 %v124
    %195 = vmatprep.subr.mxu0 0.0
    %196 = vmatpush2.msra.mxu0 0.0
    %197 = vmatprep.subr.mxu0 0.0
    %198 = vmatpush2.msra.mxu0 0.0
    %199 = vmatprep.subr.mxu0 0.0
    %200 = vmatpush2.msra.mxu0 0.0
    %201 = vmatprep.subr.mxu0 0.0
    %202 = vmatpush2.msra.mxu0 0.0
    %203 = vmatprep.subr.mxu0 0.0
    %204 = vmatpush2.msra.mxu0 0.0
    %205 = vmatprep.subr.mxu0 0.0
    %206 = vmatpush2.msra.mxu0 0.0
    %207 = vmatprep.subr.mxu0 0.0
    %208 = vmatpush2.msra.mxu0 0.0
    %209 = vmatprep.subr.mxu0 0.0
    %210 = vmatpush2.msra.mxu0 0.0
    %211 = vmatprep.subr.mxu0 0.0
    %212 = vmatpush2.msra.mxu0 0.0
    %213 = vmatprep.subr.mxu0 0.0
    %214 = vmatpush2.msra.mxu0 0.0
    %215 = vmatprep.subr.mxu0 0.0
    %216 = vmatpush2.msra.mxu0 0.0
    %217 = vmatprep.subr.mxu0 0.0
    %218 = vmatpush2.msra.mxu0 0.0
    %219 = vmatprep.subr.mxu0 0.0
    %220 = vmatpush2.msra.mxu0 0.0
    %221 = vmatprep.subr.mxu0 0.0
    %222 = vmatpush2.msra.mxu0 0.0
    %223 = vmatprep.subr.mxu0 0.0
    %224 = vmatpush2.msra.mxu0 0.0
    %225 = vmatprep.subr.mxu0 0.0
    %226 = vmatpush2.msra.mxu0 0.0
    %227 = vmatprep.mubr.f32.mxu0 0.0
    %228 = vmatmul.mubr.f32.gmra.mxu0 %v140
    %v229 = vpop.f32.mrf.mxu0
    %v230 = vadd.f32 %v136, %v229
    %v231 = vpop.f32.mrf.mxu0
    %232 = vmatprep.mubr.f32.mxu0 0.0
    %233 = vmatmul.mubr.f32.gmra.mxu0 %v143
    %v234 = vpop.f32.mrf.mxu0
    %v235 = vadd.f32 %v136, %v234
    %v236 = vpop.f32.mrf.mxu0
    %237 = vmatprep.mubr.f32.mxu0 0.0
    %238 = vmatmul.mubr.f32.gmra.mxu0 %v146
    %v239 = vpop.f32.mrf.mxu0
    %v240 = vadd.f32 %v136, %v239
    %v241 = vpop.f32.mrf.mxu0
    %242 = vmatprep.mubr.f32.mxu0 0.0
    %243 = vmatmul.mubr.f32.gmra.mxu0 %v149
    %v244 = vpop.f32.mrf.mxu0
    %v245 = vadd.f32 %v136, %v244
    %v246 = vpop.f32.mrf.mxu0
    %247 = vmatprep.mubr.f32.mxu0 0.0
    %248 = vmatmul.mubr.f32.gmra.mxu0 %v152
    %v249 = vpop.f32.mrf.mxu0
    %v250 = vadd.f32 %v136, %v249
    %v251 = vpop.f32.mrf.mxu0
    %252 = vmatprep.mubr.f32.mxu0 0.0
    %253 = vmatmul.mubr.f32.gmra.mxu0 %v155
    %v254 = vpop.f32.mrf.mxu0
    %v255 = vadd.f32 %v136, %v254
    %v256 = vpop.f32.mrf.mxu0
    %257 = vmatprep.mubr.f32.mxu0 0.0
    %258 = vmatmul.mubr.f32.gmra.mxu0 %v158
    %v259 = vpop.f32.mrf.mxu0
    %v260 = vadd.f32 %v136, %v259
    %v261 = vpop.f32.mrf.mxu0
    %262 = vmatprep.mubr.f32.mxu0 0.0
    %263 = vmatmul.mubr.f32.gmra.mxu0 %v161
    %v264 = vpop.f32.mrf.mxu0
    %v265 = vadd.f32 %v136, %v264
    %v266 = vpop.f32.mrf.mxu0
    %267 = vdwg.mxu0
    %268 = vst.msk [vmem:[#allocation2] sm:$0xff] %vm138, %v230
    %269 = vst.msk [vmem:[#allocation2 + $0x8] sm:$0xff] %vm138, %v235
    %270 = vst.msk [vmem:[#allocation2 + $0x10] sm:$0xff] %vm138, %v240
    %271 = vst.msk [vmem:[#allocation2 + $0x18] sm:$0xff] %vm138, %v245
    %272 = vst.msk [vmem:[#allocation2 + $0x20] sm:$0xff] %vm138, %v250
    %273 = vst.msk [vmem:[#allocation2 + $0x28] sm:$0xff] %vm138, %v255
    %274 = vst.msk [vmem:[#allocation2 + $0x30] sm:$0xff] %vm138, %v260
    %275 = vst.msk [vmem:[#allocation2 + $0x38] sm:$0xff] %vm138, %v265
    %v276 = vld [vmem:[#allocation10] sm:$0xff]
    %v277 = vld [vmem:[#allocation10 + $0x8] sm:$0xff]
    %v278 = vld [vmem:[#allocation10 + $0x10] sm:$0xff]
    %v279 = vld [vmem:[#allocation10 + $0x18] sm:$0xff]
    %v280 = vld [vmem:[#allocation10 + $0x20] sm:$0xff]
    %v281 = vld [vmem:[#allocation10 + $0x28] sm:$0xff]
    %v282 = vld [vmem:[#allocation10 + $0x30] sm:$0xff]
    %v283 = vld [vmem:[#allocation10 + $0x38] sm:$0xff]
    %284 = vst.msk [vmem:[#allocation4] sm:$0xff] %vm138, 0.0
    %v285 = vld [vmem:[#allocation2] sm:$0xff]
    %v286 = vld [vmem:[#allocation4] sm:$0xff]
    %v288 = vsel %vm138, %v286, 0
    %290 = vmatprep.subr.mxu0 0.0
    %291 = vmatpush1.msra.mxu0 0.0
    %292 = vmatprep.subr.mxu0 0.0
    %293 = vmatpush1.msra.mxu0 0.0
    %294 = vmatprep.subr.mxu0 0.0
    %295 = vmatpush1.msra.mxu0 0.0
    %296 = vmatprep.subr.mxu0 0.0
    %297 = vmatpush1.msra.mxu0 0.0
    %298 = vmatprep.subr.mxu0 0.0
    %299 = vmatpush1.msra.mxu0 0.0
    %300 = vmatprep.subr.mxu0 0.0
    %301 = vmatpush1.msra.mxu0 0.0
    %302 = vmatprep.subr.mxu0 0.0
    %303 = vmatpush1.msra.mxu0 0.0
    %304 = vmatprep.subr.mxu0 0.0
    %305 = vmatpush1.msra.mxu0 0.0
    %306 = vmatprep.subr.mxu0 0.0
    %307 = vmatpush1.msra.mxu0 %v283
    %308 = vmatprep.subr.mxu0 0.0
    %309 = vmatpush1.msra.mxu0 %v282
    %310 = vmatprep.subr.mxu0 0.0
    %311 = vmatpush1.msra.mxu0 %v281
    %312 = vmatprep.subr.mxu0 0.0
    %313 = vmatpush1.msra.mxu0 %v280
    %314 = vmatprep.subr.mxu0 0.0
    %315 = vmatpush1.msra.mxu0 %v279
    %316 = vmatprep.subr.mxu0 0.0
    %317 = vmatpush1.msra.mxu0 %v278
    %318 = vmatprep.subr.mxu0 0.0
    %319 = vmatpush1.msra.mxu0 %v277
    %320 = vmatprep.subr.mxu0 0.0
    %321 = vmatpush1.msra.mxu0 %v276
    %322 = vmatprep.subr.mxu0 0.0
    %323 = vmatpush2.msra.mxu0 0.0
    %324 = vmatprep.subr.mxu0 0.0
    %325 = vmatpush2.msra.mxu0 0.0
    %326 = vmatprep.subr.mxu0 0.0
    %327 = vmatpush2.msra.mxu0 0.0
    %328 = vmatprep.subr.mxu0 0.0
    %329 = vmatpush2.msra.mxu0 0.0
    %330 = vmatprep.subr.mxu0 0.0
    %331 = vmatpush2.msra.mxu0 0.0
    %332 = vmatprep.subr.mxu0 0.0
    %333 = vmatpush2.msra.mxu0 0.0
    %334 = vmatprep.subr.mxu0 0.0
    %335 = vmatpush2.msra.mxu0 0.0
    %336 = vmatprep.subr.mxu0 0.0
    %337 = vmatpush2.msra.mxu0 0.0
    %338 = vmatprep.subr.mxu0 0.0
    %339 = vmatpush2.msra.mxu0 0.0
    %340 = vmatprep.subr.mxu0 0.0
    %341 = vmatpush2.msra.mxu0 0.0
    %342 = vmatprep.subr.mxu0 0.0
    %343 = vmatpush2.msra.mxu0 0.0
    %344 = vmatprep.subr.mxu0 0.0
    %345 = vmatpush2.msra.mxu0 0.0
    %346 = vmatprep.subr.mxu0 0.0
    %347 = vmatpush2.msra.mxu0 0.0
    %348 = vmatprep.subr.mxu0 0.0
    %349 = vmatpush2.msra.mxu0 0.0
    %350 = vmatprep.subr.mxu0 0.0
    %351 = vmatpush2.msra.mxu0 0.0
    %352 = vmatprep.subr.mxu0 0.0
    %353 = vmatpush2.msra.mxu0 0.0
    %354 = vmatprep.mubr.f32.mxu0 0.0
    %355 = vmatmul.mubr.f32.gmra.mxu0 %v288
    %v356 = vpop.f32.mrf.mxu0
    %v357 = vadd.f32 0.0, %v356
    %v358 = vpop.f32.mrf.mxu0
    %359 = vdwg.mxu0
    %v360 = vadd.f32 %v285, %v357
    %v361 = vtanh.pop %v360
    %362 = vst.msk [vmem:[#allocation3] sm:$0xff] %vm138, %v361
    %363 = vst.msk [vmem:[#allocation4] sm:$0xff] %vm138, %v361
    %s364 = scalar_lea.vmem [#allocation2], 8
    %v365 = vld [vmem:[%s364] sm:$0xff]
    %v366 = vld [vmem:[#allocation4] sm:$0xff]
    %v368 = vsel %vm138, %v366, 0
    %370 = vmatprep.subr.mxu0 0.0
    %371 = vmatpush1.msra.mxu0 0.0
    %372 = vmatprep.subr.mxu0 0.0
    %373 = vmatpush1.msra.mxu0 0.0
    %374 = vmatprep.subr.mxu0 0.0
    %375 = vmatpush1.msra.mxu0 0.0
    %376 = vmatprep.subr.mxu0 0.0
    %377 = vmatpush1.msra.mxu0 0.0
    %378 = vmatprep.subr.mxu0 0.0
    %379 = vmatpush1.msra.mxu0 0.0
    %380 = vmatprep.subr.mxu0 0.0
    %381 = vmatpush1.msra.mxu0 0.0
    %382 = vmatprep.subr.mxu0 0.0
    %383 = vmatpush1.msra.mxu0 0.0
    %384 = vmatprep.subr.mxu0 0.0
    %385 = vmatpush1.msra.mxu0 0.0
    %386 = vmatprep.subr.mxu0 0.0
    %387 = vmatpush1.msra.mxu0 %v283
    %388 = vmatprep.subr.mxu0 0.0
    %389 = vmatpush1.msra.mxu0 %v282
    %390 = vmatprep.subr.mxu0 0.0
    %391 = vmatpush1.msra.mxu0 %v281
    %392 = vmatprep.subr.mxu0 0.0
    %393 = vmatpush1.msra.mxu0 %v280
    %394 = vmatprep.subr.mxu0 0.0
    %395 = vmatpush1.msra.mxu0 %v279
    %396 = vmatprep.subr.mxu0 0.0
    %397 = vmatpush1.msra.mxu0 %v278
    %398 = vmatprep.subr.mxu0 0.0
    %399 = vmatpush1.msra.mxu0 %v277
    %400 = vmatprep.subr.mxu0 0.0
    %401 = vmatpush1.msra.mxu0 %v276
    %402 = vmatprep.subr.mxu0 0.0
    %403 = vmatpush2.msra.mxu0 0.0
    %404 = vmatprep.subr.mxu0 0.0
    %405 = vmatpush2.msra.mxu0 0.0
    %406 = vmatprep.subr.mxu0 0.0
    %407 = vmatpush2.msra.mxu0 0.0
    %408 = vmatprep.subr.mxu0 0.0
    %409 = vmatpush2.msra.mxu0 0.0
    %410 = vmatprep.subr.mxu0 0.0
    %411 = vmatpush2.msra.mxu0 0.0
    %412 = vmatprep.subr.mxu0 0.0
    %413 = vmatpush2.msra.mxu0 0.0
    %414 = vmatprep.subr.mxu0 0.0
    %415 = vmatpush2.msra.mxu0 0.0
    %416 = vmatprep.subr.mxu0 0.0
    %417 = vmatpush2.msra.mxu0 0.0
    %418 = vmatprep.subr.mxu0 0.0
    %419 = vmatpush2.msra.mxu0 0.0
    %420 = vmatprep.subr.mxu0 0.0
    %421 = vmatpush2.msra.mxu0 0.0
    %422 = vmatprep.subr.mxu0 0.0
    %423 = vmatpush2.msra.mxu0 0.0
    %424 = vmatprep.subr.mxu0 0.0
    %425 = vmatpush2.msra.mxu0 0.0
    %426 = vmatprep.subr.mxu0 0.0
    %427 = vmatpush2.msra.mxu0 0.0
    %428 = vmatprep.subr.mxu0 0.0
    %429 = vmatpush2.msra.mxu0 0.0
    %430 = vmatprep.subr.mxu0 0.0
    %431 = vmatpush2.msra.mxu0 0.0
    %432 = vmatprep.subr.mxu0 0.0
    %433 = vmatpush2.msra.mxu0 0.0
    %434 = vmatprep.mubr.f32.mxu0 0.0
    %435 = vmatmul.mubr.f32.gmra.mxu0 %v368
    %v436 = vpop.f32.mrf.mxu0
    %v437 = vadd.f32 0.0, %v436
    %v438 = vpop.f32.mrf.mxu0
    %439 = vdwg.mxu0
    %v440 = vadd.f32 %v365, %v437
    %v441 = vtanh.pop %v440
    %s442 = scalar_lea.vmem [#allocation3], 8
    %443 = vst.msk [vmem:[%s442] sm:$0xff] %vm138, %v441
    %444 = vst.msk [vmem:[#allocation4] sm:$0xff] %vm138, %v441
    %s445 = scalar_lea.vmem [#allocation2], 16
    %v446 = vld [vmem:[%s445] sm:$0xff]
    %v447 = vld [vmem:[#allocation4] sm:$0xff]
    %v449 = vsel %vm138, %v447, 0
    %451 = vmatprep.subr.mxu0 0.0
    %452 = vmatpush1.msra.mxu0 0.0
    %453 = vmatprep.subr.mxu0 0.0
    %454 = vmatpush1.msra.mxu0 0.0
    %455 = vmatprep.subr.mxu0 0.0
    %456 = vmatpush1.msra.mxu0 0.0
    %457 = vmatprep.subr.mxu0 0.0
    %458 = vmatpush1.msra.mxu0 0.0
    %459 = vmatprep.subr.mxu0 0.0
    %460 = vmatpush1.msra.mxu0 0.0
    %461 = vmatprep.subr.mxu0 0.0
    %462 = vmatpush1.msra.mxu0 0.0
    %463 = vmatprep.subr.mxu0 0.0
    %464 = vmatpush1.msra.mxu0 0.0
    %465 = vmatprep.subr.mxu0 0.0
    %466 = vmatpush1.msra.mxu0 0.0
    %467 = vmatprep.subr.mxu0 0.0
    %468 = vmatpush1.msra.mxu0 %v283
    %469 = vmatprep.subr.mxu0 0.0
    %470 = vmatpush1.msra.mxu0 %v282
    %471 = vmatprep.subr.mxu0 0.0
    %472 = vmatpush1.msra.mxu0 %v281
    %473 = vmatprep.subr.mxu0 0.0
    %474 = vmatpush1.msra.mxu0 %v280
    %475 = vmatprep.subr.mxu0 0.0
    %476 = vmatpush1.msra.mxu0 %v279
    %477 = vmatprep.subr.mxu0 0.0
    %478 = vmatpush1.msra.mxu0 %v278
    %479 = vmatprep.subr.mxu0 0.0
    %480 = vmatpush1.msra.mxu0 %v277
    %481 = vmatprep.subr.mxu0 0.0
    %482 = vmatpush1.msra.mxu0 %v276
    %483 = vmatprep.subr.mxu0 0.0
    %484 = vmatpush2.msra.mxu0 0.0
    %485 = vmatprep.subr.mxu0 0.0
    %486 = vmatpush2.msra.mxu0 0.0
    %487 = vmatprep.subr.mxu0 0.0
    %488 = vmatpush2.msra.mxu0 0.0
    %489 = vmatprep.subr.mxu0 0.0
    %490 = vmatpush2.msra.mxu0 0.0
    %491 = vmatprep.subr.mxu0 0.0
    %492 = vmatpush2.msra.mxu0 0.0
    %493 = vmatprep.subr.mxu0 0.0
    %494 = vmatpush2.msra.mxu0 0.0
    %495 = vmatprep.subr.mxu0 0.0
    %496 = vmatpush2.msra.mxu0 0.0
    %497 = vmatprep.subr.mxu0 0.0
    %498 = vmatpush2.msra.mxu0 0.0
    %499 = vmatprep.subr.mxu0 0.0
    %500 = vmatpush2.msra.mxu0 0.0
    %501 = vmatprep.subr.mxu0 0.0
    %502 = vmatpush2.msra.mxu0 0.0
    %503 = vmatprep.subr.mxu0 0.0
    %504 = vmatpush2.msra.mxu0 0.0
    %505 = vmatprep.subr.mxu0 0.0
    %506 = vmatpush2.msra.mxu0 0.0
    %507 = vmatprep.subr.mxu0 0.0
    %508 = vmatpush2.msra.mxu0 0.0
    %509 = vmatprep.subr.mxu0 0.0
    %510 = vmatpush2.msra.mxu0 0.0
    %511 = vmatprep.subr.mxu0 0.0
    %512 = vmatpush2.msra.mxu0 0.0
    %513 = vmatprep.subr.mxu0 0.0
    %514 = vmatpush2.msra.mxu0 0.0
    %515 = vmatprep.mubr.f32.mxu0 0.0
    %516 = vmatmul.mubr.f32.gmra.mxu0 %v449
    %v517 = vpop.f32.mrf.mxu0
    %v518 = vadd.f32 0.0, %v517
    %v519 = vpop.f32.mrf.mxu0
    %520 = vdwg.mxu0
    %v521 = vadd.f32 %v446, %v518
    %v522 = vtanh.pop %v521
    %s523 = scalar_lea.vmem [#allocation3], 16
    %524 = vst.msk [vmem:[%s523] sm:$0xff] %vm138, %v522
    %525 = vst.msk [vmem:[#allocation4] sm:$0xff] %vm138, %v522
    %s526 = scalar_lea.vmem [#allocation2], 24
    %v527 = vld [vmem:[%s526] sm:$0xff]
    %v528 = vld [vmem:[#allocation4] sm:$0xff]
    %v530 = vsel %vm138, %v528, 0
    %532 = vmatprep.subr.mxu0 0.0
    %533 = vmatpush1.msra.mxu0 0.0
    %534 = vmatprep.subr.mxu0 0.0
    %535 = vmatpush1.msra.mxu0 0.0
    %536 = vmatprep.subr.mxu0 0.0
    %537 = vmatpush1.msra.mxu0 0.0
    %538 = vmatprep.subr.mxu0 0.0
    %539 = vmatpush1.msra.mxu0 0.0
    %540 = vmatprep.subr.mxu0 0.0
    %541 = vmatpush1.msra.mxu0 0.0
    %542 = vmatprep.subr.mxu0 0.0
    %543 = vmatpush1.msra.mxu0 0.0
    %544 = vmatprep.subr.mxu0 0.0
    %545 = vmatpush1.msra.mxu0 0.0
    %546 = vmatprep.subr.mxu0 0.0
    %547 = vmatpush1.msra.mxu0 0.0
    %548 = vmatprep.subr.mxu0 0.0
    %549 = vmatpush1.msra.mxu0 %v283
    %550 = vmatprep.subr.mxu0 0.0
    %551 = vmatpush1.msra.mxu0 %v282
    %552 = vmatprep.subr.mxu0 0.0
    %553 = vmatpush1.msra.mxu0 %v281
    %554 = vmatprep.subr.mxu0 0.0
    %555 = vmatpush1.msra.mxu0 %v280
    %556 = vmatprep.subr.mxu0 0.0
    %557 = vmatpush1.msra.mxu0 %v279
    %558 = vmatprep.subr.mxu0 0.0
    %559 = vmatpush1.msra.mxu0 %v278
    %560 = vmatprep.subr.mxu0 0.0
    %561 = vmatpush1.msra.mxu0 %v277
    %562 = vmatprep.subr.mxu0 0.0
    %563 = vmatpush1.msra.mxu0 %v276
    %564 = vmatprep.subr.mxu0 0.0
    %565 = vmatpush2.msra.mxu0 0.0
    %566 = vmatprep.subr.mxu0 0.0
    %567 = vmatpush2.msra.mxu0 0.0
    %568 = vmatprep.subr.mxu0 0.0
    %569 = vmatpush2.msra.mxu0 0.0
    %570 = vmatprep.subr.mxu0 0.0
    %571 = vmatpush2.msra.mxu0 0.0
    %572 = vmatprep.subr.mxu0 0.0
    %573 = vmatpush2.msra.mxu0 0.0
    %574 = vmatprep.subr.mxu0 0.0
    %575 = vmatpush2.msra.mxu0 0.0
    %576 = vmatprep.subr.mxu0 0.0
    %577 = vmatpush2.msra.mxu0 0.0
    %578 = vmatprep.subr.mxu0 0.0
    %579 = vmatpush2.msra.mxu0 0.0
    %580 = vmatprep.subr.mxu0 0.0
    %581 = vmatpush2.msra.mxu0 0.0
    %582 = vmatprep.subr.mxu0 0.0
    %583 = vmatpush2.msra.mxu0 0.0
    %584 = vmatprep.subr.mxu0 0.0
    %585 = vmatpush2.msra.mxu0 0.0
    %586 = vmatprep.subr.mxu0 0.0
    %587 = vmatpush2.msra.mxu0 0.0
    %588 = vmatprep.subr.mxu0 0.0
    %589 = vmatpush2.msra.mxu0 0.0
    %590 = vmatprep.subr.mxu0 0.0
    %591 = vmatpush2.msra.mxu0 0.0
    %592 = vmatprep.subr.mxu0 0.0
    %593 = vmatpush2.msra.mxu0 0.0
    %594 = vmatprep.subr.mxu0 0.0
    %595 = vmatpush2.msra.mxu0 0.0
    %596 = vmatprep.mubr.f32.mxu0 0.0
    %597 = vmatmul.mubr.f32.gmra.mxu0 %v530
    %v598 = vpop.f32.mrf.mxu0
    %v599 = vadd.f32 0.0, %v598
    %v600 = vpop.f32.mrf.mxu0
    %601 = vdwg.mxu0
    %v602 = vadd.f32 %v527, %v599
    %v603 = vtanh.pop %v602
    %s604 = scalar_lea.vmem [#allocation3], 24
    %605 = vst.msk [vmem:[%s604] sm:$0xff] %vm138, %v603
    %606 = vst.msk [vmem:[#allocation4] sm:$0xff] %vm138, %v603
    %s607 = scalar_lea.vmem [#allocation2], 32
    %v608 = vld [vmem:[%s607] sm:$0xff]
    %v609 = vld [vmem:[#allocation4] sm:$0xff]
    %v611 = vsel %vm138, %v609, 0
    %613 = vmatprep.subr.mxu0 0.0
    %614 = vmatpush1.msra.mxu0 0.0
    %615 = vmatprep.subr.mxu0 0.0
    %616 = vmatpush1.msra.mxu0 0.0
    %617 = vmatprep.subr.mxu0 0.0
    %618 = vmatpush1.msra.mxu0 0.0
    %619 = vmatprep.subr.mxu0 0.0
    %620 = vmatpush1.msra.mxu0 0.0
    %621 = vmatprep.subr.mxu0 0.0
    %622 = vmatpush1.msra.mxu0 0.0
    %623 = vmatprep.subr.mxu0 0.0
    %624 = vmatpush1.msra.mxu0 0.0
    %625 = vmatprep.subr.mxu0 0.0
    %626 = vmatpush1.msra.mxu0 0.0
    %627 = vmatprep.subr.mxu0 0.0
    %628 = vmatpush1.msra.mxu0 0.0
    %629 = vmatprep.subr.mxu0 0.0
    %630 = vmatpush1.msra.mxu0 %v283
    %631 = vmatprep.subr.mxu0 0.0
    %632 = vmatpush1.msra.mxu0 %v282
    %633 = vmatprep.subr.mxu0 0.0
    %634 = vmatpush1.msra.mxu0 %v281
    %635 = vmatprep.subr.mxu0 0.0
    %636 = vmatpush1.msra.mxu0 %v280
    %637 = vmatprep.subr.mxu0 0.0
    %638 = vmatpush1.msra.mxu0 %v279
    %639 = vmatprep.subr.mxu0 0.0
    %640 = vmatpush1.msra.mxu0 %v278
    %641 = vmatprep.subr.mxu0 0.0
    %642 = vmatpush1.msra.mxu0 %v277
    %643 = vmatprep.subr.mxu0 0.0
    %644 = vmatpush1.msra.mxu0 %v276
    %645 = vmatprep.subr.mxu0 0.0
    %646 = vmatpush2.msra.mxu0 0.0
    %647 = vmatprep.subr.mxu0 0.0
    %648 = vmatpush2.msra.mxu0 0.0
    %649 = vmatprep.subr.mxu0 0.0
    %650 = vmatpush2.msra.mxu0 0.0
    %651 = vmatprep.subr.mxu0 0.0
    %652 = vmatpush2.msra.mxu0 0.0
    %653 = vmatprep.subr.mxu0 0.0
    %654 = vmatpush2.msra.mxu0 0.0
    %655 = vmatprep.subr.mxu0 0.0
    %656 = vmatpush2.msra.mxu0 0.0
    %657 = vmatprep.subr.mxu0 0.0
    %658 = vmatpush2.msra.mxu0 0.0
    %659 = vmatprep.subr.mxu0 0.0
    %660 = vmatpush2.msra.mxu0 0.0
    %661 = vmatprep.subr.mxu0 0.0
    %662 = vmatpush2.msra.mxu0 0.0
    %663 = vmatprep.subr.mxu0 0.0
    %664 = vmatpush2.msra.mxu0 0.0
    %665 = vmatprep.subr.mxu0 0.0
    %666 = vmatpush2.msra.mxu0 0.0
    %667 = vmatprep.subr.mxu0 0.0
    %668 = vmatpush2.msra.mxu0 0.0
    %669 = vmatprep.subr.mxu0 0.0
    %670 = vmatpush2.msra.mxu0 0.0
    %671 = vmatprep.subr.mxu0 0.0
    %672 = vmatpush2.msra.mxu0 0.0
    %673 = vmatprep.subr.mxu0 0.0
    %674 = vmatpush2.msra.mxu0 0.0
    %675 = vmatprep.subr.mxu0 0.0
    %676 = vmatpush2.msra.mxu0 0.0
    %677 = vmatprep.mubr.f32.mxu0 0.0
    %678 = vmatmul.mubr.f32.gmra.mxu0 %v611
    %v679 = vpop.f32.mrf.mxu0
    %v680 = vadd.f32 0.0, %v679
    %v681 = vpop.f32.mrf.mxu0
    %682 = vdwg.mxu0
    %v683 = vadd.f32 %v608, %v680
    %v684 = vtanh.pop %v683
    %s685 = scalar_lea.vmem [#allocation3], 32
    %686 = vst.msk [vmem:[%s685] sm:$0xff] %vm138, %v684
    %687 = vst.msk [vmem:[#allocation4] sm:$0xff] %vm138, %v684
    %s688 = scalar_lea.vmem [#allocation2], 40
    %v689 = vld [vmem:[%s688] sm:$0xff]
    %v690 = vld [vmem:[#allocation4] sm:$0xff]
    %v692 = vsel %vm138, %v690, 0
    %694 = vmatprep.subr.mxu0 0.0
    %695 = vmatpush1.msra.mxu0 0.0
    %696 = vmatprep.subr.mxu0 0.0
    %697 = vmatpush1.msra.mxu0 0.0
    %698 = vmatprep.subr.mxu0 0.0
    %699 = vmatpush1.msra.mxu0 0.0
    %700 = vmatprep.subr.mxu0 0.0
    %701 = vmatpush1.msra.mxu0 0.0
    %702 = vmatprep.subr.mxu0 0.0
    %703 = vmatpush1.msra.mxu0 0.0
    %704 = vmatprep.subr.mxu0 0.0
    %705 = vmatpush1.msra.mxu0 0.0
    %706 = vmatprep.subr.mxu0 0.0
    %707 = vmatpush1.msra.mxu0 0.0
    %708 = vmatprep.subr.mxu0 0.0
    %709 = vmatpush1.msra.mxu0 0.0
    %710 = vmatprep.subr.mxu0 0.0
    %711 = vmatpush1.msra.mxu0 %v283
    %712 = vmatprep.subr.mxu0 0.0
    %713 = vmatpush1.msra.mxu0 %v282
    %714 = vmatprep.subr.mxu0 0.0
    %715 = vmatpush1.msra.mxu0 %v281
    %716 = vmatprep.subr.mxu0 0.0
    %717 = vmatpush1.msra.mxu0 %v280
    %718 = vmatprep.subr.mxu0 0.0
    %719 = vmatpush1.msra.mxu0 %v279
    %720 = vmatprep.subr.mxu0 0.0
    %721 = vmatpush1.msra.mxu0 %v278
    %722 = vmatprep.subr.mxu0 0.0
    %723 = vmatpush1.msra.mxu0 %v277
    %724 = vmatprep.subr.mxu0 0.0
    %725 = vmatpush1.msra.mxu0 %v276
    %726 = vmatprep.subr.mxu0 0.0
    %727 = vmatpush2.msra.mxu0 0.0
    %728 = vmatprep.subr.mxu0 0.0
    %729 = vmatpush2.msra.mxu0 0.0
    %730 = vmatprep.subr.mxu0 0.0
    %731 = vmatpush2.msra.mxu0 0.0
    %732 = vmatprep.subr.mxu0 0.0
    %733 = vmatpush2.msra.mxu0 0.0
    %734 = vmatprep.subr.mxu0 0.0
    %735 = vmatpush2.msra.mxu0 0.0
    %736 = vmatprep.subr.mxu0 0.0
    %737 = vmatpush2.msra.mxu0 0.0
    %738 = vmatprep.subr.mxu0 0.0
    %739 = vmatpush2.msra.mxu0 0.0
    %740 = vmatprep.subr.mxu0 0.0
    %741 = vmatpush2.msra.mxu0 0.0
    %742 = vmatprep.subr.mxu0 0.0
    %743 = vmatpush2.msra.mxu0 0.0
    %744 = vmatprep.subr.mxu0 0.0
    %745 = vmatpush2.msra.mxu0 0.0
    %746 = vmatprep.subr.mxu0 0.0
    %747 = vmatpush2.msra.mxu0 0.0
    %748 = vmatprep.subr.mxu0 0.0
    %749 = vmatpush2.msra.mxu0 0.0
    %750 = vmatprep.subr.mxu0 0.0
    %751 = vmatpush2.msra.mxu0 0.0
    %752 = vmatprep.subr.mxu0 0.0
    %753 = vmatpush2.msra.mxu0 0.0
    %754 = vmatprep.subr.mxu0 0.0
    %755 = vmatpush2.msra.mxu0 0.0
    %756 = vmatprep.subr.mxu0 0.0
    %757 = vmatpush2.msra.mxu0 0.0
    %758 = vmatprep.mubr.f32.mxu0 0.0
    %759 = vmatmul.mubr.f32.gmra.mxu0 %v692
    %v760 = vpop.f32.mrf.mxu0
    %v761 = vadd.f32 0.0, %v760
    %v762 = vpop.f32.mrf.mxu0
    %763 = vdwg.mxu0
    %v764 = vadd.f32 %v689, %v761
    %v765 = vtanh.pop %v764
    %s766 = scalar_lea.vmem [#allocation3], 40
    %767 = vst.msk [vmem:[%s766] sm:$0xff] %vm138, %v765
    %768 = vst.msk [vmem:[#allocation4] sm:$0xff] %vm138, %v765
    %s769 = scalar_lea.vmem [#allocation2], 48
    %v770 = vld [vmem:[%s769] sm:$0xff]
    %v771 = vld [vmem:[#allocation4] sm:$0xff]
    %v773 = vsel %vm138, %v771, 0
    %775 = vmatprep.subr.mxu0 0.0
    %776 = vmatpush1.msra.mxu0 0.0
    %777 = vmatprep.subr.mxu0 0.0
    %778 = vmatpush1.msra.mxu0 0.0
    %779 = vmatprep.subr.mxu0 0.0
    %780 = vmatpush1.msra.mxu0 0.0
    %781 = vmatprep.subr.mxu0 0.0
    %782 = vmatpush1.msra.mxu0 0.0
    %783 = vmatprep.subr.mxu0 0.0
    %784 = vmatpush1.msra.mxu0 0.0
    %785 = vmatprep.subr.mxu0 0.0
    %786 = vmatpush1.msra.mxu0 0.0
    %787 = vmatprep.subr.mxu0 0.0
    %788 = vmatpush1.msra.mxu0 0.0
    %789 = vmatprep.subr.mxu0 0.0
    %790 = vmatpush1.msra.mxu0 0.0
    %791 = vmatprep.subr.mxu0 0.0
    %792 = vmatpush1.msra.mxu0 %v283
    %793 = vmatprep.subr.mxu0 0.0
    %794 = vmatpush1.msra.mxu0 %v282
    %795 = vmatprep.subr.mxu0 0.0
    %796 = vmatpush1.msra.mxu0 %v281
    %797 = vmatprep.subr.mxu0 0.0
    %798 = vmatpush1.msra.mxu0 %v280
    %799 = vmatprep.subr.mxu0 0.0
    %800 = vmatpush1.msra.mxu0 %v279
    %801 = vmatprep.subr.mxu0 0.0
    %802 = vmatpush1.msra.mxu0 %v278
    %803 = vmatprep.subr.mxu0 0.0
    %804 = vmatpush1.msra.mxu0 %v277
    %805 = vmatprep.subr.mxu0 0.0
    %806 = vmatpush1.msra.mxu0 %v276
    %807 = vmatprep.subr.mxu0 0.0
    %808 = vmatpush2.msra.mxu0 0.0
    %809 = vmatprep.subr.mxu0 0.0
    %810 = vmatpush2.msra.mxu0 0.0
    %811 = vmatprep.subr.mxu0 0.0
    %812 = vmatpush2.msra.mxu0 0.0
    %813 = vmatprep.subr.mxu0 0.0
    %814 = vmatpush2.msra.mxu0 0.0
    %815 = vmatprep.subr.mxu0 0.0
    %816 = vmatpush2.msra.mxu0 0.0
    %817 = vmatprep.subr.mxu0 0.0
    %818 = vmatpush2.msra.mxu0 0.0
    %819 = vmatprep.subr.mxu0 0.0
    %820 = vmatpush2.msra.mxu0 0.0
    %821 = vmatprep.subr.mxu0 0.0
    %822 = vmatpush2.msra.mxu0 0.0
    %823 = vmatprep.subr.mxu0 0.0
    %824 = vmatpush2.msra.mxu0 0.0
    %825 = vmatprep.subr.mxu0 0.0
    %826 = vmatpush2.msra.mxu0 0.0
    %827 = vmatprep.subr.mxu0 0.0
    %828 = vmatpush2.msra.mxu0 0.0
    %829 = vmatprep.subr.mxu0 0.0
    %830 = vmatpush2.msra.mxu0 0.0
    %831 = vmatprep.subr.mxu0 0.0
    %832 = vmatpush2.msra.mxu0 0.0
    %833 = vmatprep.subr.mxu0 0.0
    %834 = vmatpush2.msra.mxu0 0.0
    %835 = vmatprep.subr.mxu0 0.0
    %836 = vmatpush2.msra.mxu0 0.0
    %837 = vmatprep.subr.mxu0 0.0
    %838 = vmatpush2.msra.mxu0 0.0
    %839 = vmatprep.mubr.f32.mxu0 0.0
    %840 = vmatmul.mubr.f32.gmra.mxu0 %v773
    %v841 = vpop.f32.mrf.mxu0
    %v842 = vadd.f32 0.0, %v841
    %v843 = vpop.f32.mrf.mxu0
    %844 = vdwg.mxu0
    %v845 = vadd.f32 %v770, %v842
    %v846 = vtanh.pop %v845
    %s847 = scalar_lea.vmem [#allocation3], 48
    %848 = vst.msk [vmem:[%s847] sm:$0xff] %vm138, %v846
    %849 = vst.msk [vmem:[#allocation4] sm:$0xff] %vm138, %v846
    %s850 = scalar_lea.vmem [#allocation2], 56
    %v851 = vld [vmem:[%s850] sm:$0xff]
    %v852 = vld [vmem:[#allocation4] sm:$0xff]
    %v854 = vsel %vm138, %v852, 0
    %856 = vmatprep.subr.mxu0 0.0
    %857 = vmatpush1.msra.mxu0 0.0
    %858 = vmatprep.subr.mxu0 0.0
    %859 = vmatpush1.msra.mxu0 0.0
    %860 = vmatprep.subr.mxu0 0.0
    %861 = vmatpush1.msra.mxu0 0.0
    %862 = vmatprep.subr.mxu0 0.0
    %863 = vmatpush1.msra.mxu0 0.0
    %864 = vmatprep.subr.mxu0 0.0
    %865 = vmatpush1.msra.mxu0 0.0
    %866 = vmatprep.subr.mxu0 0.0
    %867 = vmatpush1.msra.mxu0 0.0
    %868 = vmatprep.subr.mxu0 0.0
    %869 = vmatpush1.msra.mxu0 0.0
    %870 = vmatprep.subr.mxu0 0.0
    %871 = vmatpush1.msra.mxu0 0.0
    %872 = vmatprep.subr.mxu0 0.0
    %873 = vmatpush1.msra.mxu0 %v283
    %874 = vmatprep.subr.mxu0 0.0
    %875 = vmatpush1.msra.mxu0 %v282
    %876 = vmatprep.subr.mxu0 0.0
    %877 = vmatpush1.msra.mxu0 %v281
    %878 = vmatprep.subr.mxu0 0.0
    %879 = vmatpush1.msra.mxu0 %v280
    %880 = vmatprep.subr.mxu0 0.0
    %881 = vmatpush1.msra.mxu0 %v279
    %882 = vmatprep.subr.mxu0 0.0
    %883 = vmatpush1.msra.mxu0 %v278
    %884 = vmatprep.subr.mxu0 0.0
    %885 = vmatpush1.msra.mxu0 %v277
    %886 = vmatprep.subr.mxu0 0.0
    %887 = vmatpush1.msra.mxu0 %v276
    %888 = vmatprep.subr.mxu0 0.0
    %889 = vmatpush2.msra.mxu0 0.0
    %890 = vmatprep.subr.mxu0 0.0
    %891 = vmatpush2.msra.mxu0 0.0
    %892 = vmatprep.subr.mxu0 0.0
    %893 = vmatpush2.msra.mxu0 0.0
    %894 = vmatprep.subr.mxu0 0.0
    %895 = vmatpush2.msra.mxu0 0.0
    %896 = vmatprep.subr.mxu0 0.0
    %897 = vmatpush2.msra.mxu0 0.0
    %898 = vmatprep.subr.mxu0 0.0
    %899 = vmatpush2.msra.mxu0 0.0
    %900 = vmatprep.subr.mxu0 0.0
    %901 = vmatpush2.msra.mxu0 0.0
    %902 = vmatprep.subr.mxu0 0.0
    %903 = vmatpush2.msra.mxu0 0.0
    %904 = vmatprep.subr.mxu0 0.0
    %905 = vmatpush2.msra.mxu0 0.0
    %906 = vmatprep.subr.mxu0 0.0
    %907 = vmatpush2.msra.mxu0 0.0
    %908 = vmatprep.subr.mxu0 0.0
    %909 = vmatpush2.msra.mxu0 0.0
    %910 = vmatprep.subr.mxu0 0.0
    %911 = vmatpush2.msra.mxu0 0.0
    %912 = vmatprep.subr.mxu0 0.0
    %913 = vmatpush2.msra.mxu0 0.0
    %914 = vmatprep.subr.mxu0 0.0
    %915 = vmatpush2.msra.mxu0 0.0
    %916 = vmatprep.subr.mxu0 0.0
    %917 = vmatpush2.msra.mxu0 0.0
    %918 = vmatprep.subr.mxu0 0.0
    %919 = vmatpush2.msra.mxu0 0.0
    %920 = vmatprep.mubr.f32.mxu0 0.0
    %921 = vmatmul.mubr.f32.gmra.mxu0 %v854
    %v922 = vpop.f32.mrf.mxu0
    %v923 = vadd.f32 0.0, %v922
    %v924 = vpop.f32.mrf.mxu0
    %925 = vdwg.mxu0
    %v926 = vadd.f32 %v851, %v923
    %v927 = vtanh.pop %v926
    %s928 = scalar_lea.vmem [#allocation3], 56
    %929 = vst.msk [vmem:[%s928] sm:$0xff] %vm138, %v927
    %930 = vst.msk [vmem:[#allocation4] sm:$0xff] %vm138, %v927
    %v931 = vld [vmem:[%s6] sm:$0x1]
    %v932 = vld [vmem:[#allocation3] sm:$0xff]
    %v933 = vld [vmem:[#allocation3 + $0x8] sm:$0xff]
    %v934 = vld [vmem:[#allocation3 + $0x10] sm:$0xff]
    %v935 = vld [vmem:[#allocation3 + $0x18] sm:$0xff]
    %v936 = vld [vmem:[#allocation3 + $0x20] sm:$0xff]
    %v937 = vld [vmem:[#allocation3 + $0x28] sm:$0xff]
    %v938 = vld [vmem:[#allocation3 + $0x30] sm:$0xff]
    %v939 = vld [vmem:[#allocation3 + $0x38] sm:$0xff]
    %v940 = vld [vmem:[#allocation11] sm:$0xff]
    %v941 = vld [vmem:[#allocation11 + $0x8] sm:$0xff]
    %v942 = vld [vmem:[#allocation11 + $0x10] sm:$0xff]
    %v943 = vld [vmem:[#allocation11 + $0x18] sm:$0xff]
    %v944 = vld [vmem:[#allocation11 + $0x20] sm:$0xff]
    %v945 = vld [vmem:[#allocation11 + $0x28] sm:$0xff]
    %v946 = vld [vmem:[#allocation11 + $0x30] sm:$0xff]
    %v947 = vld [vmem:[#allocation11 + $0x38] sm:$0xff]
    %v949 = vlaneseq
    %v950 = vshrl.u32 %v949, 7
    %v951 = vsub.s32 0, %v950
    %v952 = vrot.slane %v931, %v951
    %v955 = vsel %vm138, %v932, 0
    %v958 = vsel %vm138, %v933, 0
    %v961 = vsel %vm138, %v934, 0
    %v964 = vsel %vm138, %v935, 0
    %v967 = vsel %vm138, %v936, 0
    %v970 = vsel %vm138, %v937, 0
    %v973 = vsel %vm138, %v938, 0
    %v976 = vsel %vm138, %v939, 0
    %978 = vmatprep.subr.mxu0 0.0
    %979 = vmatpush1.msra.mxu0 0.0
    %980 = vmatprep.subr.mxu0 0.0
    %981 = vmatpush1.msra.mxu0 0.0
    %982 = vmatprep.subr.mxu0 0.0
    %983 = vmatpush1.msra.mxu0 0.0
    %984 = vmatprep.subr.mxu0 0.0
    %985 = vmatpush1.msra.mxu0 0.0
    %986 = vmatprep.subr.mxu0 0.0
    %987 = vmatpush1.msra.mxu0 0.0
    %988 = vmatprep.subr.mxu0 0.0
    %989 = vmatpush1.msra.mxu0 0.0
    %990 = vmatprep.subr.mxu0 0.0
    %991 = vmatpush1.msra.mxu0 0.0
    %992 = vmatprep.subr.mxu0 0.0
    %993 = vmatpush1.msra.mxu0 0.0
    %994 = vmatprep.subr.mxu0 0.0
    %995 = vmatpush1.msra.mxu0 %v947
    %996 = vmatprep.subr.mxu0 0.0
    %997 = vmatpush1.msra.mxu0 %v946
    %998 = vmatprep.subr.mxu0 0.0
    %999 = vmatpush1.msra.mxu0 %v945
    %1000 = vmatprep.subr.mxu0 0.0
    %1001 = vmatpush1.msra.mxu0 %v944
    %1002 = vmatprep.subr.mxu0 0.0
    %1003 = vmatpush1.msra.mxu0 %v943
    %1004 = vmatprep.subr.mxu0 0.0
    %1005 = vmatpush1.msra.mxu0 %v942
    %1006 = vmatprep.subr.mxu0 0.0
    %1007 = vmatpush1.msra.mxu0 %v941
    %1008 = vmatprep.subr.mxu0 0.0
    %1009 = vmatpush1.msra.mxu0 %v940
    %1010 = vmatprep.subr.mxu0 0.0
    %1011 = vmatpush2.msra.mxu0 0.0
    %1012 = vmatprep.subr.mxu0 0.0
    %1013 = vmatpush2.msra.mxu0 0.0
    %1014 = vmatprep.subr.mxu0 0.0
    %1015 = vmatpush2.msra.mxu0 0.0
    %1016 = vmatprep.subr.mxu0 0.0
    %1017 = vmatpush2.msra.mxu0 0.0
    %1018 = vmatprep.subr.mxu0 0.0
    %1019 = vmatpush2.msra.mxu0 0.0
    %1020 = vmatprep.subr.mxu0 0.0
    %1021 = vmatpush2.msra.mxu0 0.0
    %1022 = vmatprep.subr.mxu0 0.0
    %1023 = vmatpush2.msra.mxu0 0.0
    %1024 = vmatprep.subr.mxu0 0.0
    %1025 = vmatpush2.msra.mxu0 0.0
    %1026 = vmatprep.subr.mxu0 0.0
    %1027 = vmatpush2.msra.mxu0 0.0
    %1028 = vmatprep.subr.mxu0 0.0
    %1029 = vmatpush2.msra.mxu0 0.0
    %1030 = vmatprep.subr.mxu0 0.0
    %1031 = vmatpush2.msra.mxu0 0.0
    %1032 = vmatprep.subr.mxu0 0.0
    %1033 = vmatpush2.msra.mxu0 0.0
    %1034 = vmatprep.subr.mxu0 0.0
    %1035 = vmatpush2.msra.mxu0 0.0
    %1036 = vmatprep.subr.mxu0 0.0
    %1037 = vmatpush2.msra.mxu0 0.0
    %1038 = vmatprep.subr.mxu0 0.0
    %1039 = vmatpush2.msra.mxu0 0.0
    %1040 = vmatprep.subr.mxu0 0.0
    %1041 = vmatpush2.msra.mxu0 0.0
    %1042 = vmatprep.mubr.f32.mxu0 0.0
    %1043 = vmatmul.mubr.f32.gmra.mxu0 %v955
    %v1044 = vpop.f32.mrf.mxu0
    %v1045 = vadd.f32 %v952, %v1044
    %v1046 = vpop.f32.mrf.mxu0
    %1047 = vmatprep.mubr.f32.mxu0 0.0
    %1048 = vmatmul.mubr.f32.gmra.mxu0 %v958
    %v1049 = vpop.f32.mrf.mxu0
    %v1050 = vadd.f32 %v952, %v1049
    %v1051 = vpop.f32.mrf.mxu0
    %1052 = vmatprep.mubr.f32.mxu0 0.0
    %1053 = vmatmul.mubr.f32.gmra.mxu0 %v961
    %v1054 = vpop.f32.mrf.mxu0
    %v1055 = vadd.f32 %v952, %v1054
    %v1056 = vpop.f32.mrf.mxu0
    %1057 = vmatprep.mubr.f32.mxu0 0.0
    %1058 = vmatmul.mubr.f32.gmra.mxu0 %v964
    %v1059 = vpop.f32.mrf.mxu0
    %v1060 = vadd.f32 %v952, %v1059
    %v1061 = vpop.f32.mrf.mxu0
    %1062 = vmatprep.mubr.f32.mxu0 0.0
    %1063 = vmatmul.mubr.f32.gmra.mxu0 %v967
    %v1064 = vpop.f32.mrf.mxu0
    %v1065 = vadd.f32 %v952, %v1064
    %v1066 = vpop.f32.mrf.mxu0
    %1067 = vmatprep.mubr.f32.mxu0 0.0
    %1068 = vmatmul.mubr.f32.gmra.mxu0 %v970
    %v1069 = vpop.f32.mrf.mxu0
    %v1070 = vadd.f32 %v952, %v1069
    %v1071 = vpop.f32.mrf.mxu0
    %1072 = vmatprep.mubr.f32.mxu0 0.0
    %1073 = vmatmul.mubr.f32.gmra.mxu0 %v973
    %v1074 = vpop.f32.mrf.mxu0
    %v1075 = vadd.f32 %v952, %v1074
    %v1076 = vpop.f32.mrf.mxu0
    %1077 = vmatprep.mubr.f32.mxu0 0.0
    %1078 = vmatmul.mubr.f32.gmra.mxu0 %v976
    %v1079 = vpop.f32.mrf.mxu0
    %v1080 = vadd.f32 %v952, %v1079
    %v1081 = vpop.f32.mrf.mxu0
    %1082 = vdwg.mxu0
    %1083 = vst.msk [vmem:[#allocation2] sm:$0xff] %vm138, %v1045
    %1084 = vst.msk [vmem:[#allocation2 + $0x8] sm:$0xff] %vm138, %v1050
    %1085 = vst.msk [vmem:[#allocation2 + $0x10] sm:$0xff] %vm138, %v1055
    %1086 = vst.msk [vmem:[#allocation2 + $0x18] sm:$0xff] %vm138, %v1060
    %1087 = vst.msk [vmem:[#allocation2 + $0x20] sm:$0xff] %vm138, %v1065
    %1088 = vst.msk [vmem:[#allocation2 + $0x28] sm:$0xff] %vm138, %v1070
    %1089 = vst.msk [vmem:[#allocation2 + $0x30] sm:$0xff] %vm138, %v1075
    %1090 = vst.msk [vmem:[#allocation2 + $0x38] sm:$0xff] %vm138, %v1080
    %v1091 = vld [vmem:[#allocation13] sm:$0xff]
    %v1092 = vld [vmem:[#allocation13 + $0x8] sm:$0xff]
    %v1093 = vld [vmem:[#allocation13 + $0x10] sm:$0xff]
    %v1094 = vld [vmem:[#allocation13 + $0x18] sm:$0xff]
    %v1095 = vld [vmem:[#allocation13 + $0x20] sm:$0xff]
    %v1096 = vld [vmem:[#allocation13 + $0x28] sm:$0xff]
    %v1097 = vld [vmem:[#allocation13 + $0x30] sm:$0xff]
    %v1098 = vld [vmem:[#allocation13 + $0x38] sm:$0xff]
    %1099 = vst.msk [vmem:[#allocation4] sm:$0xff] %vm138, 0.0
    %v1100 = vld [vmem:[#allocation2] sm:$0xff]
    %v1101 = vld [vmem:[#allocation4] sm:$0xff]
    %v1103 = vsel %vm138, %v1101, 0
    %1105 = vmatprep.subr.mxu0 0.0
    %1106 = vmatpush1.msra.mxu0 0.0
    %1107 = vmatprep.subr.mxu0 0.0
    %1108 = vmatpush1.msra.mxu0 0.0
    %1109 = vmatprep.subr.mxu0 0.0
    %1110 = vmatpush1.msra.mxu0 0.0
    %1111 = vmatprep.subr.mxu0 0.0
    %1112 = vmatpush1.msra.mxu0 0.0
    %1113 = vmatprep.subr.mxu0 0.0
    %1114 = vmatpush1.msra.mxu0 0.0
    %1115 = vmatprep.subr.mxu0 0.0
    %1116 = vmatpush1.msra.mxu0 0.0
    %1117 = vmatprep.subr.mxu0 0.0
    %1118 = vmatpush1.msra.mxu0 0.0
    %1119 = vmatprep.subr.mxu0 0.0
    %1120 = vmatpush1.msra.mxu0 0.0
    %1121 = vmatprep.subr.mxu0 0.0
    %1122 = vmatpush1.msra.mxu0 %v1098
    %1123 = vmatprep.subr.mxu0 0.0
    %1124 = vmatpush1.msra.mxu0 %v1097
    %1125 = vmatprep.subr.mxu0 0.0
    %1126 = vmatpush1.msra.mxu0 %v1096
    %1127 = vmatprep.subr.mxu0 0.0
    %1128 = vmatpush1.msra.mxu0 %v1095
    %1129 = vmatprep.subr.mxu0 0.0
    %1130 = vmatpush1.msra.mxu0 %v1094
    %1131 = vmatprep.subr.mxu0 0.0
    %1132 = vmatpush1.msra.mxu0 %v1093
    %1133 = vmatprep.subr.mxu0 0.0
    %1134 = vmatpush1.msra.mxu0 %v1092
    %1135 = vmatprep.subr.mxu0 0.0
    %1136 = vmatpush1.msra.mxu0 %v1091
    %1137 = vmatprep.subr.mxu0 0.0
    %1138 = vmatpush2.msra.mxu0 0.0
    %1139 = vmatprep.subr.mxu0 0.0
    %1140 = vmatpush2.msra.mxu0 0.0
    %1141 = vmatprep.subr.mxu0 0.0
    %1142 = vmatpush2.msra.mxu0 0.0
    %1143 = vmatprep.subr.mxu0 0.0
    %1144 = vmatpush2.msra.mxu0 0.0
    %1145 = vmatprep.subr.mxu0 0.0
    %1146 = vmatpush2.msra.mxu0 0.0
    %1147 = vmatprep.subr.mxu0 0.0
    %1148 = vmatpush2.msra.mxu0 0.0
    %1149 = vmatprep.subr.mxu0 0.0
    %1150 = vmatpush2.msra.mxu0 0.0
    %1151 = vmatprep.subr.mxu0 0.0
    %1152 = vmatpush2.msra.mxu0 0.0
    %1153 = vmatprep.subr.mxu0 0.0
    %1154 = vmatpush2.msra.mxu0 0.0
    %1155 = vmatprep.subr.mxu0 0.0
    %1156 = vmatpush2.msra.mxu0 0.0
    %1157 = vmatprep.subr.mxu0 0.0
    %1158 = vmatpush2.msra.mxu0 0.0
    %1159 = vmatprep.subr.mxu0 0.0
    %1160 = vmatpush2.msra.mxu0 0.0
    %1161 = vmatprep.subr.mxu0 0.0
    %1162 = vmatpush2.msra.mxu0 0.0
    %1163 = vmatprep.subr.mxu0 0.0
    %1164 = vmatpush2.msra.mxu0 0.0
    %1165 = vmatprep.subr.mxu0 0.0
    %1166 = vmatpush2.msra.mxu0 0.0
    %1167 = vmatprep.subr.mxu0 0.0
    %1168 = vmatpush2.msra.mxu0 0.0
    %1169 = vmatprep.mubr.f32.mxu0 0.0
    %1170 = vmatmul.mubr.f32.gmra.mxu0 %v1103
    %v1171 = vpop.f32.mrf.mxu0
    %v1172 = vadd.f32 0.0, %v1171
    %v1173 = vpop.f32.mrf.mxu0
    %1174 = vdwg.mxu0
    %v1175 = vadd.f32 %v1100, %v1172
    %v1176 = vtanh.pop %v1175
    %1177 = vst.msk [vmem:[#allocation3] sm:$0xff] %vm138, %v1176
    %1178 = vst.msk [vmem:[#allocation4] sm:$0xff] %vm138, %v1176
    %v1179 = vld [vmem:[%s364] sm:$0xff]
    %v1180 = vld [vmem:[#allocation4] sm:$0xff]
    %v1182 = vsel %vm138, %v1180, 0
    %1184 = vmatprep.subr.mxu0 0.0
    %1185 = vmatpush1.msra.mxu0 0.0
    %1186 = vmatprep.subr.mxu0 0.0
    %1187 = vmatpush1.msra.mxu0 0.0
    %1188 = vmatprep.subr.mxu0 0.0
    %1189 = vmatpush1.msra.mxu0 0.0
    %1190 = vmatprep.subr.mxu0 0.0
    %1191 = vmatpush1.msra.mxu0 0.0
    %1192 = vmatprep.subr.mxu0 0.0
    %1193 = vmatpush1.msra.mxu0 0.0
    %1194 = vmatprep.subr.mxu0 0.0
    %1195 = vmatpush1.msra.mxu0 0.0
    %1196 = vmatprep.subr.mxu0 0.0
    %1197 = vmatpush1.msra.mxu0 0.0
    %1198 = vmatprep.subr.mxu0 0.0
    %1199 = vmatpush1.msra.mxu0 0.0
    %1200 = vmatprep.subr.mxu0 0.0
    %1201 = vmatpush1.msra.mxu0 %v1098
    %1202 = vmatprep.subr.mxu0 0.0
    %1203 = vmatpush1.msra.mxu0 %v1097
    %1204 = vmatprep.subr.mxu0 0.0
    %1205 = vmatpush1.msra.mxu0 %v1096
    %1206 = vmatprep.subr.mxu0 0.0
    %1207 = vmatpush1.msra.mxu0 %v1095
    %1208 = vmatprep.subr.mxu0 0.0
    %1209 = vmatpush1.msra.mxu0 %v1094
    %1210 = vmatprep.subr.mxu0 0.0
    %1211 = vmatpush1.msra.mxu0 %v1093
    %1212 = vmatprep.subr.mxu0 0.0
    %1213 = vmatpush1.msra.mxu0 %v1092
    %1214 = vmatprep.subr.mxu0 0.0
    %1215 = vmatpush1.msra.mxu0 %v1091
    %1216 = vmatprep.subr.mxu0 0.0
    %1217 = vmatpush2.msra.mxu0 0.0
    %1218 = vmatprep.subr.mxu0 0.0
    %1219 = vmatpush2.msra.mxu0 0.0
    %1220 = vmatprep.subr.mxu0 0.0
    %1221 = vmatpush2.msra.mxu0 0.0
    %1222 = vmatprep.subr.mxu0 0.0
    %1223 = vmatpush2.msra.mxu0 0.0
    %1224 = vmatprep.subr.mxu0 0.0
    %1225 = vmatpush2.msra.mxu0 0.0
    %1226 = vmatprep.subr.mxu0 0.0
    %1227 = vmatpush2.msra.mxu0 0.0
    %1228 = vmatprep.subr.mxu0 0.0
    %1229 = vmatpush2.msra.mxu0 0.0
    %1230 = vmatprep.subr.mxu0 0.0
    %1231 = vmatpush2.msra.mxu0 0.0
    %1232 = vmatprep.subr.mxu0 0.0
    %1233 = vmatpush2.msra.mxu0 0.0
    %1234 = vmatprep.subr.mxu0 0.0
    %1235 = vmatpush2.msra.mxu0 0.0
    %1236 = vmatprep.subr.mxu0 0.0
    %1237 = vmatpush2.msra.mxu0 0.0
    %1238 = vmatprep.subr.mxu0 0.0
    %1239 = vmatpush2.msra.mxu0 0.0
    %1240 = vmatprep.subr.mxu0 0.0
    %1241 = vmatpush2.msra.mxu0 0.0
    %1242 = vmatprep.subr.mxu0 0.0
    %1243 = vmatpush2.msra.mxu0 0.0
    %1244 = vmatprep.subr.mxu0 0.0
    %1245 = vmatpush2.msra.mxu0 0.0
    %1246 = vmatprep.subr.mxu0 0.0
    %1247 = vmatpush2.msra.mxu0 0.0
    %1248 = vmatprep.mubr.f32.mxu0 0.0
    %1249 = vmatmul.mubr.f32.gmra.mxu0 %v1182
    %v1250 = vpop.f32.mrf.mxu0
    %v1251 = vadd.f32 0.0, %v1250
    %v1252 = vpop.f32.mrf.mxu0
    %1253 = vdwg.mxu0
    %v1254 = vadd.f32 %v1179, %v1251
    %v1255 = vtanh.pop %v1254
    %1256 = vst.msk [vmem:[%s442] sm:$0xff] %vm138, %v1255
    %1257 = vst.msk [vmem:[#allocation4] sm:$0xff] %vm138, %v1255
    %v1258 = vld [vmem:[%s445] sm:$0xff]
    %v1259 = vld [vmem:[#allocation4] sm:$0xff]
    %v1261 = vsel %vm138, %v1259, 0
    %1263 = vmatprep.subr.mxu0 0.0
    %1264 = vmatpush1.msra.mxu0 0.0
    %1265 = vmatprep.subr.mxu0 0.0
    %1266 = vmatpush1.msra.mxu0 0.0
    %1267 = vmatprep.subr.mxu0 0.0
    %1268 = vmatpush1.msra.mxu0 0.0
    %1269 = vmatprep.subr.mxu0 0.0
    %1270 = vmatpush1.msra.mxu0 0.0
    %1271 = vmatprep.subr.mxu0 0.0
    %1272 = vmatpush1.msra.mxu0 0.0
    %1273 = vmatprep.subr.mxu0 0.0
    %1274 = vmatpush1.msra.mxu0 0.0
    %1275 = vmatprep.subr.mxu0 0.0
    %1276 = vmatpush1.msra.mxu0 0.0
    %1277 = vmatprep.subr.mxu0 0.0
    %1278 = vmatpush1.msra.mxu0 0.0
    %1279 = vmatprep.subr.mxu0 0.0
    %1280 = vmatpush1.msra.mxu0 %v1098
    %1281 = vmatprep.subr.mxu0 0.0
    %1282 = vmatpush1.msra.mxu0 %v1097
    %1283 = vmatprep.subr.mxu0 0.0
    %1284 = vmatpush1.msra.mxu0 %v1096
    %1285 = vmatprep.subr.mxu0 0.0
    %1286 = vmatpush1.msra.mxu0 %v1095
    %1287 = vmatprep.subr.mxu0 0.0
    %1288 = vmatpush1.msra.mxu0 %v1094
    %1289 = vmatprep.subr.mxu0 0.0
    %1290 = vmatpush1.msra.mxu0 %v1093
    %1291 = vmatprep.subr.mxu0 0.0
    %1292 = vmatpush1.msra.mxu0 %v1092
    %1293 = vmatprep.subr.mxu0 0.0
    %1294 = vmatpush1.msra.mxu0 %v1091
    %1295 = vmatprep.subr.mxu0 0.0
    %1296 = vmatpush2.msra.mxu0 0.0
    %1297 = vmatprep.subr.mxu0 0.0
    %1298 = vmatpush2.msra.mxu0 0.0
    %1299 = vmatprep.subr.mxu0 0.0
    %1300 = vmatpush2.msra.mxu0 0.0
    %1301 = vmatprep.subr.mxu0 0.0
    %1302 = vmatpush2.msra.mxu0 0.0
    %1303 = vmatprep.subr.mxu0 0.0
    %1304 = vmatpush2.msra.mxu0 0.0
    %1305 = vmatprep.subr.mxu0 0.0
    %1306 = vmatpush2.msra.mxu0 0.0
    %1307 = vmatprep.subr.mxu0 0.0
    %1308 = vmatpush2.msra.mxu0 0.0
    %1309 = vmatprep.subr.mxu0 0.0
    %1310 = vmatpush2.msra.mxu0 0.0
    %1311 = vmatprep.subr.mxu0 0.0
    %1312 = vmatpush2.msra.mxu0 0.0
    %1313 = vmatprep.subr.mxu0 0.0
    %1314 = vmatpush2.msra.mxu0 0.0
    %1315 = vmatprep.subr.mxu0 0.0
    %1316 = vmatpush2.msra.mxu0 0.0
    %1317 = vmatprep.subr.mxu0 0.0
    %1318 = vmatpush2.msra.mxu0 0.0
    %1319 = vmatprep.subr.mxu0 0.0
    %1320 = vmatpush2.msra.mxu0 0.0
    %1321 = vmatprep.subr.mxu0 0.0
    %1322 = vmatpush2.msra.mxu0 0.0
    %1323 = vmatprep.subr.mxu0 0.0
    %1324 = vmatpush2.msra.mxu0 0.0
    %1325 = vmatprep.subr.mxu0 0.0
    %1326 = vmatpush2.msra.mxu0 0.0
    %1327 = vmatprep.mubr.f32.mxu0 0.0
    %1328 = vmatmul.mubr.f32.gmra.mxu0 %v1261
    %v1329 = vpop.f32.mrf.mxu0
    %v1330 = vadd.f32 0.0, %v1329
    %v1331 = vpop.f32.mrf.mxu0
    %1332 = vdwg.mxu0
    %v1333 = vadd.f32 %v1258, %v1330
    %v1334 = vtanh.pop %v1333
    %1335 = vst.msk [vmem:[%s523] sm:$0xff] %vm138, %v1334
    %1336 = vst.msk [vmem:[#allocation4] sm:$0xff] %vm138, %v1334
    %v1337 = vld [vmem:[%s526] sm:$0xff]
    %v1338 = vld [vmem:[#allocation4] sm:$0xff]
    %v1340 = vsel %vm138, %v1338, 0
    %1342 = vmatprep.subr.mxu0 0.0
    %1343 = vmatpush1.msra.mxu0 0.0
    %1344 = vmatprep.subr.mxu0 0.0
    %1345 = vmatpush1.msra.mxu0 0.0
    %1346 = vmatprep.subr.mxu0 0.0
    %1347 = vmatpush1.msra.mxu0 0.0
    %1348 = vmatprep.subr.mxu0 0.0
    %1349 = vmatpush1.msra.mxu0 0.0
    %1350 = vmatprep.subr.mxu0 0.0
    %1351 = vmatpush1.msra.mxu0 0.0
    %1352 = vmatprep.subr.mxu0 0.0
    %1353 = vmatpush1.msra.mxu0 0.0
    %1354 = vmatprep.subr.mxu0 0.0
    %1355 = vmatpush1.msra.mxu0 0.0
    %1356 = vmatprep.subr.mxu0 0.0
    %1357 = vmatpush1.msra.mxu0 0.0
    %1358 = vmatprep.subr.mxu0 0.0
    %1359 = vmatpush1.msra.mxu0 %v1098
    %1360 = vmatprep.subr.mxu0 0.0
    %1361 = vmatpush1.msra.mxu0 %v1097
    %1362 = vmatprep.subr.mxu0 0.0
    %1363 = vmatpush1.msra.mxu0 %v1096
    %1364 = vmatprep.subr.mxu0 0.0
    %1365 = vmatpush1.msra.mxu0 %v1095
    %1366 = vmatprep.subr.mxu0 0.0
    %1367 = vmatpush1.msra.mxu0 %v1094
    %1368 = vmatprep.subr.mxu0 0.0
    %1369 = vmatpush1.msra.mxu0 %v1093
    %1370 = vmatprep.subr.mxu0 0.0
    %1371 = vmatpush1.msra.mxu0 %v1092
    %1372 = vmatprep.subr.mxu0 0.0
    %1373 = vmatpush1.msra.mxu0 %v1091
    %1374 = vmatprep.subr.mxu0 0.0
    %1375 = vmatpush2.msra.mxu0 0.0
    %1376 = vmatprep.subr.mxu0 0.0
    %1377 = vmatpush2.msra.mxu0 0.0
    %1378 = vmatprep.subr.mxu0 0.0
    %1379 = vmatpush2.msra.mxu0 0.0
    %1380 = vmatprep.subr.mxu0 0.0
    %1381 = vmatpush2.msra.mxu0 0.0
    %1382 = vmatprep.subr.mxu0 0.0
    %1383 = vmatpush2.msra.mxu0 0.0
    %1384 = vmatprep.subr.mxu0 0.0
    %1385 = vmatpush2.msra.mxu0 0.0
    %1386 = vmatprep.subr.mxu0 0.0
    %1387 = vmatpush2.msra.mxu0 0.0
    %1388 = vmatprep.subr.mxu0 0.0
    %1389 = vmatpush2.msra.mxu0 0.0
    %1390 = vmatprep.subr.mxu0 0.0
    %1391 = vmatpush2.msra.mxu0 0.0
    %1392 = vmatprep.subr.mxu0 0.0
    %1393 = vmatpush2.msra.mxu0 0.0
    %1394 = vmatprep.subr.mxu0 0.0
    %1395 = vmatpush2.msra.mxu0 0.0
    %1396 = vmatprep.subr.mxu0 0.0
    %1397 = vmatpush2.msra.mxu0 0.0
    %1398 = vmatprep.subr.mxu0 0.0
    %1399 = vmatpush2.msra.mxu0 0.0
    %1400 = vmatprep.subr.mxu0 0.0
    %1401 = vmatpush2.msra.mxu0 0.0
    %1402 = vmatprep.subr.mxu0 0.0
    %1403 = vmatpush2.msra.mxu0 0.0
    %1404 = vmatprep.subr.mxu0 0.0
    %1405 = vmatpush2.msra.mxu0 0.0
    %1406 = vmatprep.mubr.f32.mxu0 0.0
    %1407 = vmatmul.mubr.f32.gmra.mxu0 %v1340
    %v1408 = vpop.f32.mrf.mxu0
    %v1409 = vadd.f32 0.0, %v1408
    %v1410 = vpop.f32.mrf.mxu0
    %1411 = vdwg.mxu0
    %v1412 = vadd.f32 %v1337, %v1409
    %v1413 = vtanh.pop %v1412
    %1414 = vst.msk [vmem:[%s604] sm:$0xff] %vm138, %v1413
    %1415 = vst.msk [vmem:[#allocation4] sm:$0xff] %vm138, %v1413
    %v1416 = vld [vmem:[%s607] sm:$0xff]
    %v1417 = vld [vmem:[#allocation4] sm:$0xff]
    %v1419 = vsel %vm138, %v1417, 0
    %1421 = vmatprep.subr.mxu0 0.0
    %1422 = vmatpush1.msra.mxu0 0.0
    %1423 = vmatprep.subr.mxu0 0.0
    %1424 = vmatpush1.msra.mxu0 0.0
    %1425 = vmatprep.subr.mxu0 0.0
    %1426 = vmatpush1.msra.mxu0 0.0
    %1427 = vmatprep.subr.mxu0 0.0
    %1428 = vmatpush1.msra.mxu0 0.0
    %1429 = vmatprep.subr.mxu0 0.0
    %1430 = vmatpush1.msra.mxu0 0.0
    %1431 = vmatprep.subr.mxu0 0.0
    %1432 = vmatpush1.msra.mxu0 0.0
    %1433 = vmatprep.subr.mxu0 0.0
    %1434 = vmatpush1.msra.mxu0 0.0
    %1435 = vmatprep.subr.mxu0 0.0
    %1436 = vmatpush1.msra.mxu0 0.0
    %1437 = vmatprep.subr.mxu0 0.0
    %1438 = vmatpush1.msra.mxu0 %v1098
    %1439 = vmatprep.subr.mxu0 0.0
    %1440 = vmatpush1.msra.mxu0 %v1097
    %1441 = vmatprep.subr.mxu0 0.0
    %1442 = vmatpush1.msra.mxu0 %v1096
    %1443 = vmatprep.subr.mxu0 0.0
    %1444 = vmatpush1.msra.mxu0 %v1095
    %1445 = vmatprep.subr.mxu0 0.0
    %1446 = vmatpush1.msra.mxu0 %v1094
    %1447 = vmatprep.subr.mxu0 0.0
    %1448 = vmatpush1.msra.mxu0 %v1093
    %1449 = vmatprep.subr.mxu0 0.0
    %1450 = vmatpush1.msra.mxu0 %v1092
    %1451 = vmatprep.subr.mxu0 0.0
    %1452 = vmatpush1.msra.mxu0 %v1091
    %1453 = vmatprep.subr.mxu0 0.0
    %1454 = vmatpush2.msra.mxu0 0.0
    %1455 = vmatprep.subr.mxu0 0.0
    %1456 = vmatpush2.msra.mxu0 0.0
    %1457 = vmatprep.subr.mxu0 0.0
    %1458 = vmatpush2.msra.mxu0 0.0
    %1459 = vmatprep.subr.mxu0 0.0
    %1460 = vmatpush2.msra.mxu0 0.0
    %1461 = vmatprep.subr.mxu0 0.0
    %1462 = vmatpush2.msra.mxu0 0.0
    %1463 = vmatprep.subr.mxu0 0.0
    %1464 = vmatpush2.msra.mxu0 0.0
    %1465 = vmatprep.subr.mxu0 0.0
    %1466 = vmatpush2.msra.mxu0 0.0
    %1467 = vmatprep.subr.mxu0 0.0
    %1468 = vmatpush2.msra.mxu0 0.0
    %1469 = vmatprep.subr.mxu0 0.0
    %1470 = vmatpush2.msra.mxu0 0.0
    %1471 = vmatprep.subr.mxu0 0.0
    %1472 = vmatpush2.msra.mxu0 0.0
    %1473 = vmatprep.subr.mxu0 0.0
    %1474 = vmatpush2.msra.mxu0 0.0
    %1475 = vmatprep.subr.mxu0 0.0
    %1476 = vmatpush2.msra.mxu0 0.0
    %1477 = vmatprep.subr.mxu0 0.0
    %1478 = vmatpush2.msra.mxu0 0.0
    %1479 = vmatprep.subr.mxu0 0.0
    %1480 = vmatpush2.msra.mxu0 0.0
    %1481 = vmatprep.subr.mxu0 0.0
    %1482 = vmatpush2.msra.mxu0 0.0
    %1483 = vmatprep.subr.mxu0 0.0
    %1484 = vmatpush2.msra.mxu0 0.0
    %1485 = vmatprep.mubr.f32.mxu0 0.0
    %1486 = vmatmul.mubr.f32.gmra.mxu0 %v1419
    %v1487 = vpop.f32.mrf.mxu0
    %v1488 = vadd.f32 0.0, %v1487
    %v1489 = vpop.f32.mrf.mxu0
    %1490 = vdwg.mxu0
    %v1491 = vadd.f32 %v1416, %v1488
    %v1492 = vtanh.pop %v1491
    %1493 = vst.msk [vmem:[%s685] sm:$0xff] %vm138, %v1492
    %1494 = vst.msk [vmem:[#allocation4] sm:$0xff] %vm138, %v1492
    %v1495 = vld [vmem:[%s688] sm:$0xff]
    %v1496 = vld [vmem:[#allocation4] sm:$0xff]
    %v1498 = vsel %vm138, %v1496, 0
    %1500 = vmatprep.subr.mxu0 0.0
    %1501 = vmatpush1.msra.mxu0 0.0
    %1502 = vmatprep.subr.mxu0 0.0
    %1503 = vmatpush1.msra.mxu0 0.0
    %1504 = vmatprep.subr.mxu0 0.0
    %1505 = vmatpush1.msra.mxu0 0.0
    %1506 = vmatprep.subr.mxu0 0.0
    %1507 = vmatpush1.msra.mxu0 0.0
    %1508 = vmatprep.subr.mxu0 0.0
    %1509 = vmatpush1.msra.mxu0 0.0
    %1510 = vmatprep.subr.mxu0 0.0
    %1511 = vmatpush1.msra.mxu0 0.0
    %1512 = vmatprep.subr.mxu0 0.0
    %1513 = vmatpush1.msra.mxu0 0.0
    %1514 = vmatprep.subr.mxu0 0.0
    %1515 = vmatpush1.msra.mxu0 0.0
    %1516 = vmatprep.subr.mxu0 0.0
    %1517 = vmatpush1.msra.mxu0 %v1098
    %1518 = vmatprep.subr.mxu0 0.0
    %1519 = vmatpush1.msra.mxu0 %v1097
    %1520 = vmatprep.subr.mxu0 0.0
    %1521 = vmatpush1.msra.mxu0 %v1096
    %1522 = vmatprep.subr.mxu0 0.0
    %1523 = vmatpush1.msra.mxu0 %v1095
    %1524 = vmatprep.subr.mxu0 0.0
    %1525 = vmatpush1.msra.mxu0 %v1094
    %1526 = vmatprep.subr.mxu0 0.0
    %1527 = vmatpush1.msra.mxu0 %v1093
    %1528 = vmatprep.subr.mxu0 0.0
    %1529 = vmatpush1.msra.mxu0 %v1092
    %1530 = vmatprep.subr.mxu0 0.0
    %1531 = vmatpush1.msra.mxu0 %v1091
    %1532 = vmatprep.subr.mxu0 0.0
    %1533 = vmatpush2.msra.mxu0 0.0
    %1534 = vmatprep.subr.mxu0 0.0
    %1535 = vmatpush2.msra.mxu0 0.0
    %1536 = vmatprep.subr.mxu0 0.0
    %1537 = vmatpush2.msra.mxu0 0.0
    %1538 = vmatprep.subr.mxu0 0.0
    %1539 = vmatpush2.msra.mxu0 0.0
    %1540 = vmatprep.subr.mxu0 0.0
    %1541 = vmatpush2.msra.mxu0 0.0
    %1542 = vmatprep.subr.mxu0 0.0
    %1543 = vmatpush2.msra.mxu0 0.0
    %1544 = vmatprep.subr.mxu0 0.0
    %1545 = vmatpush2.msra.mxu0 0.0
    %1546 = vmatprep.subr.mxu0 0.0
    %1547 = vmatpush2.msra.mxu0 0.0
    %1548 = vmatprep.subr.mxu0 0.0
    %1549 = vmatpush2.msra.mxu0 0.0
    %1550 = vmatprep.subr.mxu0 0.0
    %1551 = vmatpush2.msra.mxu0 0.0
    %1552 = vmatprep.subr.mxu0 0.0
    %1553 = vmatpush2.msra.mxu0 0.0
    %1554 = vmatprep.subr.mxu0 0.0
    %1555 = vmatpush2.msra.mxu0 0.0
    %1556 = vmatprep.subr.mxu0 0.0
    %1557 = vmatpush2.msra.mxu0 0.0
    %1558 = vmatprep.subr.mxu0 0.0
    %1559 = vmatpush2.msra.mxu0 0.0
    %1560 = vmatprep.subr.mxu0 0.0
    %1561 = vmatpush2.msra.mxu0 0.0
    %1562 = vmatprep.subr.mxu0 0.0
    %1563 = vmatpush2.msra.mxu0 0.0
    %1564 = vmatprep.mubr.f32.mxu0 0.0
    %1565 = vmatmul.mubr.f32.gmra.mxu0 %v1498
    %v1566 = vpop.f32.mrf.mxu0
    %v1567 = vadd.f32 0.0, %v1566
    %v1568 = vpop.f32.mrf.mxu0
    %1569 = vdwg.mxu0
    %v1570 = vadd.f32 %v1495, %v1567
    %v1571 = vtanh.pop %v1570
    %1572 = vst.msk [vmem:[%s766] sm:$0xff] %vm138, %v1571
    %1573 = vst.msk [vmem:[#allocation4] sm:$0xff] %vm138, %v1571
    %v1574 = vld [vmem:[%s769] sm:$0xff]
    %v1575 = vld [vmem:[#allocation4] sm:$0xff]
    %v1577 = vsel %vm138, %v1575, 0
    %1579 = vmatprep.subr.mxu0 0.0
    %1580 = vmatpush1.msra.mxu0 0.0
    %1581 = vmatprep.subr.mxu0 0.0
    %1582 = vmatpush1.msra.mxu0 0.0
    %1583 = vmatprep.subr.mxu0 0.0
    %1584 = vmatpush1.msra.mxu0 0.0
    %1585 = vmatprep.subr.mxu0 0.0
    %1586 = vmatpush1.msra.mxu0 0.0
    %1587 = vmatprep.subr.mxu0 0.0
    %1588 = vmatpush1.msra.mxu0 0.0
    %1589 = vmatprep.subr.mxu0 0.0
    %1590 = vmatpush1.msra.mxu0 0.0
    %1591 = vmatprep.subr.mxu0 0.0
    %1592 = vmatpush1.msra.mxu0 0.0
    %1593 = vmatprep.subr.mxu0 0.0
    %1594 = vmatpush1.msra.mxu0 0.0
    %1595 = vmatprep.subr.mxu0 0.0
    %1596 = vmatpush1.msra.mxu0 %v1098
    %1597 = vmatprep.subr.mxu0 0.0
    %1598 = vmatpush1.msra.mxu0 %v1097
    %1599 = vmatprep.subr.mxu0 0.0
    %1600 = vmatpush1.msra.mxu0 %v1096
    %1601 = vmatprep.subr.mxu0 0.0
    %1602 = vmatpush1.msra.mxu0 %v1095
    %1603 = vmatprep.subr.mxu0 0.0
    %1604 = vmatpush1.msra.mxu0 %v1094
    %1605 = vmatprep.subr.mxu0 0.0
    %1606 = vmatpush1.msra.mxu0 %v1093
    %1607 = vmatprep.subr.mxu0 0.0
    %1608 = vmatpush1.msra.mxu0 %v1092
    %1609 = vmatprep.subr.mxu0 0.0
    %1610 = vmatpush1.msra.mxu0 %v1091
    %1611 = vmatprep.subr.mxu0 0.0
    %1612 = vmatpush2.msra.mxu0 0.0
    %1613 = vmatprep.subr.mxu0 0.0
    %1614 = vmatpush2.msra.mxu0 0.0
    %1615 = vmatprep.subr.mxu0 0.0
    %1616 = vmatpush2.msra.mxu0 0.0
    %1617 = vmatprep.subr.mxu0 0.0
    %1618 = vmatpush2.msra.mxu0 0.0
    %1619 = vmatprep.subr.mxu0 0.0
    %1620 = vmatpush2.msra.mxu0 0.0
    %1621 = vmatprep.subr.mxu0 0.0
    %1622 = vmatpush2.msra.mxu0 0.0
    %1623 = vmatprep.subr.mxu0 0.0
    %1624 = vmatpush2.msra.mxu0 0.0
    %1625 = vmatprep.subr.mxu0 0.0
    %1626 = vmatpush2.msra.mxu0 0.0
    %1627 = vmatprep.subr.mxu0 0.0
    %1628 = vmatpush2.msra.mxu0 0.0
    %1629 = vmatprep.subr.mxu0 0.0
    %1630 = vmatpush2.msra.mxu0 0.0
    %1631 = vmatprep.subr.mxu0 0.0
    %1632 = vmatpush2.msra.mxu0 0.0
    %1633 = vmatprep.subr.mxu0 0.0
    %1634 = vmatpush2.msra.mxu0 0.0
    %1635 = vmatprep.subr.mxu0 0.0
    %1636 = vmatpush2.msra.mxu0 0.0
    %1637 = vmatprep.subr.mxu0 0.0
    %1638 = vmatpush2.msra.mxu0 0.0
    %1639 = vmatprep.subr.mxu0 0.0
    %1640 = vmatpush2.msra.mxu0 0.0
    %1641 = vmatprep.subr.mxu0 0.0
    %1642 = vmatpush2.msra.mxu0 0.0
    %1643 = vmatprep.mubr.f32.mxu0 0.0
    %1644 = vmatmul.mubr.f32.gmra.mxu0 %v1577
    %v1645 = vpop.f32.mrf.mxu0
    %v1646 = vadd.f32 0.0, %v1645
    %v1647 = vpop.f32.mrf.mxu0
    %1648 = vdwg.mxu0
    %v1649 = vadd.f32 %v1574, %v1646
    %v1650 = vtanh.pop %v1649
    %1651 = vst.msk [vmem:[%s847] sm:$0xff] %vm138, %v1650
    %1652 = vst.msk [vmem:[#allocation4] sm:$0xff] %vm138, %v1650
    %v1653 = vld [vmem:[%s850] sm:$0xff]
    %v1654 = vld [vmem:[#allocation4] sm:$0xff]
    %v1656 = vsel %vm138, %v1654, 0
    %1658 = vmatprep.subr.mxu0 0.0
    %1659 = vmatpush1.msra.mxu0 0.0
    %1660 = vmatprep.subr.mxu0 0.0
    %1661 = vmatpush1.msra.mxu0 0.0
    %1662 = vmatprep.subr.mxu0 0.0
    %1663 = vmatpush1.msra.mxu0 0.0
    %1664 = vmatprep.subr.mxu0 0.0
    %1665 = vmatpush1.msra.mxu0 0.0
    %1666 = vmatprep.subr.mxu0 0.0
    %1667 = vmatpush1.msra.mxu0 0.0
    %1668 = vmatprep.subr.mxu0 0.0
    %1669 = vmatpush1.msra.mxu0 0.0
    %1670 = vmatprep.subr.mxu0 0.0
    %1671 = vmatpush1.msra.mxu0 0.0
    %1672 = vmatprep.subr.mxu0 0.0
    %1673 = vmatpush1.msra.mxu0 0.0
    %1674 = vmatprep.subr.mxu0 0.0
    %1675 = vmatpush1.msra.mxu0 %v1098
    %1676 = vmatprep.subr.mxu0 0.0
    %1677 = vmatpush1.msra.mxu0 %v1097
    %1678 = vmatprep.subr.mxu0 0.0
    %1679 = vmatpush1.msra.mxu0 %v1096
    %1680 = vmatprep.subr.mxu0 0.0
    %1681 = vmatpush1.msra.mxu0 %v1095
    %1682 = vmatprep.subr.mxu0 0.0
    %1683 = vmatpush1.msra.mxu0 %v1094
    %1684 = vmatprep.subr.mxu0 0.0
    %1685 = vmatpush1.msra.mxu0 %v1093
    %1686 = vmatprep.subr.mxu0 0.0
    %1687 = vmatpush1.msra.mxu0 %v1092
    %1688 = vmatprep.subr.mxu0 0.0
    %1689 = vmatpush1.msra.mxu0 %v1091
    %1690 = vmatprep.subr.mxu0 0.0
    %1691 = vmatpush2.msra.mxu0 0.0
    %1692 = vmatprep.subr.mxu0 0.0
    %1693 = vmatpush2.msra.mxu0 0.0
    %1694 = vmatprep.subr.mxu0 0.0
    %1695 = vmatpush2.msra.mxu0 0.0
    %1696 = vmatprep.subr.mxu0 0.0
    %1697 = vmatpush2.msra.mxu0 0.0
    %1698 = vmatprep.subr.mxu0 0.0
    %1699 = vmatpush2.msra.mxu0 0.0
    %1700 = vmatprep.subr.mxu0 0.0
    %1701 = vmatpush2.msra.mxu0 0.0
    %1702 = vmatprep.subr.mxu0 0.0
    %1703 = vmatpush2.msra.mxu0 0.0
    %1704 = vmatprep.subr.mxu0 0.0
    %1705 = vmatpush2.msra.mxu0 0.0
    %1706 = vmatprep.subr.mxu0 0.0
    %1707 = vmatpush2.msra.mxu0 0.0
    %1708 = vmatprep.subr.mxu0 0.0
    %1709 = vmatpush2.msra.mxu0 0.0
    %1710 = vmatprep.subr.mxu0 0.0
    %1711 = vmatpush2.msra.mxu0 0.0
    %1712 = vmatprep.subr.mxu0 0.0
    %1713 = vmatpush2.msra.mxu0 0.0
    %1714 = vmatprep.subr.mxu0 0.0
    %1715 = vmatpush2.msra.mxu0 0.0
    %1716 = vmatprep.subr.mxu0 0.0
    %1717 = vmatpush2.msra.mxu0 0.0
    %1718 = vmatprep.subr.mxu0 0.0
    %1719 = vmatpush2.msra.mxu0 0.0
    %1720 = vmatprep.subr.mxu0 0.0
    %1721 = vmatpush2.msra.mxu0 0.0
    %1722 = vmatprep.mubr.f32.mxu0 0.0
    %1723 = vmatmul.mubr.f32.gmra.mxu0 %v1656
    %v1724 = vpop.f32.mrf.mxu0
    %v1725 = vadd.f32 0.0, %v1724
    %v1726 = vpop.f32.mrf.mxu0
    %1727 = vdwg.mxu0
    %v1728 = vadd.f32 %v1653, %v1725
    %v1729 = vtanh.pop %v1728
    %1730 = vst.msk [vmem:[%s928] sm:$0xff] %vm138, %v1729
    %1731 = vst.msk [vmem:[#allocation4] sm:$0xff] %vm138, %v1729
    %v1732 = vld [vmem:[#allocation3] sm:$0xff]
    %v1733 = vld [vmem:[#allocation3 + $0x8] sm:$0xff]
    %v1734 = vld [vmem:[#allocation3 + $0x10] sm:$0xff]
    %v1735 = vld [vmem:[#allocation3 + $0x18] sm:$0xff]
    %v1736 = vld [vmem:[#allocation3 + $0x20] sm:$0xff]
    %v1737 = vld [vmem:[#allocation3 + $0x28] sm:$0xff]
    %v1738 = vld [vmem:[#allocation3 + $0x30] sm:$0xff]
    %v1739 = vld [vmem:[#allocation3 + $0x38] sm:$0xff]
    %v1740 = vld [vmem:[#allocation14] sm:$0xff]
    %v1741 = vld [vmem:[#allocation14 + $0x8] sm:$0xff]
    %v1742 = vld [vmem:[#allocation14 + $0x10] sm:$0xff]
    %v1743 = vld [vmem:[#allocation14 + $0x18] sm:$0xff]
    %v1744 = vld [vmem:[#allocation14 + $0x20] sm:$0xff]
    %v1745 = vld [vmem:[#allocation14 + $0x28] sm:$0xff]
    %v1746 = vld [vmem:[#allocation14 + $0x30] sm:$0xff]
    %v1747 = vld [vmem:[#allocation14 + $0x38] sm:$0xff]
    %v1748 = vld [vmem:[%s8] sm:$0x1]
    %v1750 = vlaneseq
    %v1751 = vshrl.u32 %v1750, 7
    %v1752 = vsub.s32 0, %v1751
    %v1753 = vrot.slane %v1748, %v1752
    %v1756 = vsel %vm138, %v1732, 0
    %v1759 = vsel %vm138, %v1733, 0
    %v1762 = vsel %vm138, %v1734, 0
    %v1765 = vsel %vm138, %v1735, 0
    %v1768 = vsel %vm138, %v1736, 0
    %v1771 = vsel %vm138, %v1737, 0
    %v1774 = vsel %vm138, %v1738, 0
    %v1777 = vsel %vm138, %v1739, 0
    %1779 = vmatprep.subr.mxu0 0.0
    %1780 = vmatpush1.msra.mxu0 0.0
    %1781 = vmatprep.subr.mxu0 0.0
    %1782 = vmatpush1.msra.mxu0 0.0
    %1783 = vmatprep.subr.mxu0 0.0
    %1784 = vmatpush1.msra.mxu0 0.0
    %1785 = vmatprep.subr.mxu0 0.0
    %1786 = vmatpush1.msra.mxu0 0.0
    %1787 = vmatprep.subr.mxu0 0.0
    %1788 = vmatpush1.msra.mxu0 0.0
    %1789 = vmatprep.subr.mxu0 0.0
    %1790 = vmatpush1.msra.mxu0 0.0
    %1791 = vmatprep.subr.mxu0 0.0
    %1792 = vmatpush1.msra.mxu0 0.0
    %1793 = vmatprep.subr.mxu0 0.0
    %1794 = vmatpush1.msra.mxu0 0.0
    %1795 = vmatprep.subr.mxu0 0.0
    %1796 = vmatpush1.msra.mxu0 %v1747
    %1797 = vmatprep.subr.mxu0 0.0
    %1798 = vmatpush1.msra.mxu0 %v1746
    %1799 = vmatprep.subr.mxu0 0.0
    %1800 = vmatpush1.msra.mxu0 %v1745
    %1801 = vmatprep.subr.mxu0 0.0
    %1802 = vmatpush1.msra.mxu0 %v1744
    %1803 = vmatprep.subr.mxu0 0.0
    %1804 = vmatpush1.msra.mxu0 %v1743
    %1805 = vmatprep.subr.mxu0 0.0
    %1806 = vmatpush1.msra.mxu0 %v1742
    %1807 = vmatprep.subr.mxu0 0.0
    %1808 = vmatpush1.msra.mxu0 %v1741
    %1809 = vmatprep.subr.mxu0 0.0
    %1810 = vmatpush1.msra.mxu0 %v1740
    %1811 = vmatprep.subr.mxu0 0.0
    %1812 = vmatpush2.msra.mxu0 0.0
    %1813 = vmatprep.subr.mxu0 0.0
    %1814 = vmatpush2.msra.mxu0 0.0
    %1815 = vmatprep.subr.mxu0 0.0
    %1816 = vmatpush2.msra.mxu0 0.0
    %1817 = vmatprep.subr.mxu0 0.0
    %1818 = vmatpush2.msra.mxu0 0.0
    %1819 = vmatprep.subr.mxu0 0.0
    %1820 = vmatpush2.msra.mxu0 0.0
    %1821 = vmatprep.subr.mxu0 0.0
    %1822 = vmatpush2.msra.mxu0 0.0
    %1823 = vmatprep.subr.mxu0 0.0
    %1824 = vmatpush2.msra.mxu0 0.0
    %1825 = vmatprep.subr.mxu0 0.0
    %1826 = vmatpush2.msra.mxu0 0.0
    %1827 = vmatprep.subr.mxu0 0.0
    %1828 = vmatpush2.msra.mxu0 0.0
    %1829 = vmatprep.subr.mxu0 0.0
    %1830 = vmatpush2.msra.mxu0 0.0
    %1831 = vmatprep.subr.mxu0 0.0
    %1832 = vmatpush2.msra.mxu0 0.0
    %1833 = vmatprep.subr.mxu0 0.0
    %1834 = vmatpush2.msra.mxu0 0.0
    %1835 = vmatprep.subr.mxu0 0.0
    %1836 = vmatpush2.msra.mxu0 0.0
    %1837 = vmatprep.subr.mxu0 0.0
    %1838 = vmatpush2.msra.mxu0 0.0
    %1839 = vmatprep.subr.mxu0 0.0
    %1840 = vmatpush2.msra.mxu0 0.0
    %1841 = vmatprep.subr.mxu0 0.0
    %1842 = vmatpush2.msra.mxu0 0.0
    %1843 = vmatprep.mubr.f32.mxu0 0.0
    %1844 = vmatmul.mubr.f32.gmra.mxu0 %v1756
    %v1845 = vpop.f32.mrf.mxu0
    %v1846 = vadd.f32 %v1753, %v1845
    %v1847 = vpop.f32.mrf.mxu0
    %1848 = vmatprep.mubr.f32.mxu0 0.0
    %1849 = vmatmul.mubr.f32.gmra.mxu0 %v1759
    %v1850 = vpop.f32.mrf.mxu0
    %v1851 = vadd.f32 %v1753, %v1850
    %v1852 = vpop.f32.mrf.mxu0
    %1853 = vmatprep.mubr.f32.mxu0 0.0
    %1854 = vmatmul.mubr.f32.gmra.mxu0 %v1762
    %v1855 = vpop.f32.mrf.mxu0
    %v1856 = vadd.f32 %v1753, %v1855
    %v1857 = vpop.f32.mrf.mxu0
    %1858 = vmatprep.mubr.f32.mxu0 0.0
    %1859 = vmatmul.mubr.f32.gmra.mxu0 %v1765
    %v1860 = vpop.f32.mrf.mxu0
    %v1861 = vadd.f32 %v1753, %v1860
    %v1862 = vpop.f32.mrf.mxu0
    %1863 = vmatprep.mubr.f32.mxu0 0.0
    %1864 = vmatmul.mubr.f32.gmra.mxu0 %v1768
    %v1865 = vpop.f32.mrf.mxu0
    %v1866 = vadd.f32 %v1753, %v1865
    %v1867 = vpop.f32.mrf.mxu0
    %1868 = vmatprep.mubr.f32.mxu0 0.0
    %1869 = vmatmul.mubr.f32.gmra.mxu0 %v1771
    %v1870 = vpop.f32.mrf.mxu0
    %v1871 = vadd.f32 %v1753, %v1870
    %v1872 = vpop.f32.mrf.mxu0
    %1873 = vmatprep.mubr.f32.mxu0 0.0
    %1874 = vmatmul.mubr.f32.gmra.mxu0 %v1774
    %v1875 = vpop.f32.mrf.mxu0
    %v1876 = vadd.f32 %v1753, %v1875
    %v1877 = vpop.f32.mrf.mxu0
    %1878 = vmatprep.mubr.f32.mxu0 0.0
    %1879 = vmatmul.mubr.f32.gmra.mxu0 %v1777
    %v1880 = vpop.f32.mrf.mxu0
    %v1881 = vadd.f32 %v1753, %v1880
    %v1882 = vpop.f32.mrf.mxu0
    %1883 = vdwg.mxu0
    %1884 = vst [vmem:[#allocation16] sm:$0xff] %v1846
    %1885 = vst [vmem:[#allocation16 + $0x8] sm:$0xff] %v1851
    %1886 = vst [vmem:[#allocation16 + $0x10] sm:$0xff] %v1856
    %1887 = vst [vmem:[#allocation16 + $0x18] sm:$0xff] %v1861
    %1888 = vst [vmem:[#allocation16 + $0x20] sm:$0xff] %v1866
    %1889 = vst [vmem:[#allocation16 + $0x28] sm:$0xff] %v1871
    %1890 = vst [vmem:[#allocation16 + $0x30] sm:$0xff] %v1876
    %1891 = vst [vmem:[#allocation16 + $0x38] sm:$0xff] %v1881
    // Predicated region
    $region62: #{tpu_custom_call.1} parent=1 // pred_check
      _
    $region63: #{tpu_custom_call.1} parent=1 // pred_check_branch
      %1893 = sbr.rel (0) target = $region65
    $region64: #{tpu_custom_call.1} parent=1 // pred_region
      %s1895 = ssub.s32 1024, 1024
      %1896 = vsyncadd [#allocation7], %s1895
      %s1897 = sshll.u32 [#allocation16], 4
      %s1898 = int_to_ptr.vmem [resolvable:$true] %s1897
      %1903 = dma.vmem_to_hbm [thread:$0]  %s1898, 1024, %s9, [#allocation7], 128, 128, 8
    $region65: #{tpu_custom_call.1} parent=1 // pred_fallthru
      _
    // Predicated region
    $region66: #{tpu_custom_call.1} parent=1 // pred_check
      _
    $region67: #{tpu_custom_call.1} parent=1 // pred_check_branch
      %1905 = sbr.rel (0) target = $region69
    $region68: #{tpu_custom_call.1} parent=1 // pred_region
      %1906 = dma.done [#allocation7], 1024
    $region69: #{tpu_custom_call.1} parent=1 // pred_fallthru
      _
    %1907 = vsyncpa [#allocation6], 1
    %1908 = vsyncpa [#allocation9], 1
    %1909 = vsyncpa [#allocation12], 1
    %1910 = vsyncpa [#allocation15], 1
    %1911 = vsyncpa [#allocation7], 1

</llo_original>
